<compile_context>
chip_gen: v6e
topology: v6e:2x2x1
jax: 0.10.0
libtpu: 0.0.40
codegen_flags: <defaults>
</compile_context>

<pallas_src>
import numpy as np
import jax
import jax.numpy as jnp
from jax import lax
from jax.experimental import pallas as pl
from jax.experimental.pallas import tpu as pltpu

BN_EPS = 1e-5


# ----------------------------- kernel ---------------------------------------

def _make_decoder_kernel(B, C, depth):
    R = B * 64                     # batch * padded 8x8 spatial, on sublanes
    inv_n = 1.0 / float(B * 49)    # BN statistics are over the B*49 valid pixels

    def shifted(x, off):
        # shifted[r] = x[(r + off) % R].  Rows with h==7 or w==7 are kept zero,
        # so every out-of-image tap reads a zero row -> this IS the pad-1 conv
        # source, no masking of the rolled operand needed.
        s = (-off) % R
        return x if s == 0 else pltpu.roll(x, s, 0)

    def kernel(x0_ref, mask_ref,
               c1w_ref, c1b_ref, g1_ref, be1_ref,
               c2w_ref, c2b_ref, g2_ref, be2_ref,
               dw_ref, dbias_ref, o_ref):
        # Mask is pre-broadcast to (R, C) in the wrapper and loaded once here,
        # so every use inside the depth loop is a plain VPU multiply.
        maskC = mask_ref[...]

        def conv3x3(x, wk, bias):
            # kh/kw-factored 3x3 pad-1 conv (exact: conv is linear, so the two
            # shift stages compose to the original 9 tap offsets
            # (kh-1)*8 + (kw-1), all of which land on zero rows when
            # out-of-image, including wraps across batch blocks).
            #   stage 1 (kh): xk[:, kh*C + c]  = x[p + (kh-1)*8, c]
            #   MXU:          H[:, kw*C + co]  = sum_{kh,c} xk * W[kh,kw,c,co]
            #   stage 2 (kw): out[p, co]       = sum_kw H[p + (kw-1), kw*C+co]
            # Rolls by +-8 are whole-vreg sublane moves (near-free); only the
            # two +-1 rolls in stage 2 do real cross-sublane XLU work.
            xk = jnp.concatenate(
                [shifted(x, -8).astype(jnp.bfloat16),
                 x.astype(jnp.bfloat16),
                 shifted(x, 8).astype(jnp.bfloat16)], axis=1)        # (R,3C) bf16
            h = jnp.dot(xk, wk, preferred_element_type=jnp.float32)  # (R,3C) f32
            out = (h[:, C:2 * C]
                   + shifted(h[:, :C], -1)
                   + shifted(h[:, 2 * C:], 1))
            return out + bias

        def batchnorm(x, gamma, beta):
            # train-mode BatchNorm2d, single pass, masked to the valid rows.
            # sum(x) and sum(x^2) are fused into one cross-sublane reduction
            # over a (R, 2C) slab to halve the XLU reduce work.
            xm = x * maskC
            stats = jnp.sum(jnp.concatenate([xm, xm * xm], axis=1),
                            axis=0, keepdims=True) * inv_n           # (1, 2C)
            mean = stats[:, :C]
            var = jnp.maximum(stats[:, C:] - mean * mean, 0.0)
            return (x - mean) * (lax.rsqrt(var + BN_EPS) * gamma) + beta

        def block(d, x):                                             # ConvnetBlock
            h = conv3x3(x, c1w_ref[d], c1b_ref[d])
            h = jnp.maximum(batchnorm(h, g1_ref[d], be1_ref[d]), 0.0) * maskC
            h = conv3x3(h, c2w_ref[d], c2b_ref[d])
            h = batchnorm(h, g2_ref[d], be2_ref[d])
            return jnp.maximum(h + x, 0.0) * maskC                   # residual+relu

        x = lax.fori_loop(0, depth, block, x0_ref[...])

        # ConvTranspose2d(C, 1, 4, stride=4): stride == kernel -> no overlap,
        # one matmul whose 16 columns index the 4x4 sub-block; + per-pixel
        # output bias; sigmoid (EUP exp + approx reciprocal, ~2^-12 rel err).
        z = jnp.dot(x.astype(jnp.bfloat16), dw_ref[...],
                    preferred_element_type=jnp.float32) + dbias_ref[...]
        o_ref[...] = pl.reciprocal(1.0 + jnp.exp(-z), approx=True)

    return kernel


# ----------------------------- parameters -----------------------------------

def init_params(key, capacity, depth):
    C = capacity
    ks = jax.random.split(key, 6)
    n = lambda k, shape: 0.01 * jax.random.normal(k, shape, jnp.float32)
    return dict(
        embed_w=n(ks[0], (C * 49, 49)),          # Linear(49, C*7*7, bias=False)
        conv1_w=n(ks[1], (depth, C, C, 3, 3)),   # Conv2d (Cout, Cin, 3, 3)
        conv2_w=n(ks[2], (depth, C, C, 3, 3)),
        conv1_b=jnp.zeros((depth, C), jnp.float32),
        conv2_b=jnp.zeros((depth, C), jnp.float32),
        bn1_g=n(ks[3], (depth, C)),              # module init: weight ~ N(0, 0.01)
        bn1_b=jnp.zeros((depth, C), jnp.float32),
        bn2_g=n(ks[4], (depth, C)),
        bn2_b=jnp.zeros((depth, C), jnp.float32),
        deconv_w=n(ks[5], (C, 1, 4, 4)),         # ConvTranspose2d(C, 1, 4, stride=4)
        deconv_b=jnp.zeros((), jnp.float32),
        bias28=jnp.zeros((28, 28), jnp.float32), # self.bias (28, 28), init 0
    )


def pack_params(p, *, capacity, depth):
    """One-time repack of PyTorch-layout weights into kernel layout.

    Done once per weight set (not per forward call): bf16 factored conv
    weights, per-block BN/bias rows, deconv matrix and output-bias slab.
    """
    C = capacity
    # embed: (49, 49*C) with column p*C + c  (p = h*7 + w, channel minor)
    embed_w_pc = (p['embed_w'].reshape(C, 49, 49).transpose(1, 0, 2)
                  .reshape(49 * C, 49).T)

    # conv weights -> kh/kw-factored (depth, 3C, 3C), bf16 for the MXU:
    #   Wk[d, kh*C + ci, kw*C + co] = W[d, co, ci, kh, kw]
    def factored(w):
        return (w.transpose(0, 3, 2, 4, 1).reshape(depth, 3 * C, 3 * C)
                .astype(jnp.bfloat16))

    # deconv output bias: per-(h, w) 4x4 sub-block of self.bias + deconv bias.
    db = (p['bias28'].reshape(7, 4, 7, 4).transpose(0, 2, 1, 3)
          .reshape(7, 7, 16))
    db = jnp.pad(db, ((0, 1), (0, 1), (0, 0))).reshape(64, 16) + p['deconv_b']

    return dict(
        embed_w_pc=embed_w_pc,
        c1w=factored(p['conv1_w']), c2w=factored(p['conv2_w']),
        c1b=p['conv1_b'].reshape(depth, 1, C),
        c2b=p['conv2_b'].reshape(depth, 1, C),
        g1=p['bn1_g'].reshape(depth, 1, C), be1=p['bn1_b'].reshape(depth, 1, C),
        g2=p['bn2_g'].reshape(depth, 1, C), be2=p['bn2_b'].reshape(depth, 1, C),
        dw=p['deconv_w'].reshape(C, 16).astype(jnp.bfloat16),
        dbias64=db,
    )


# ----------------------------- forward --------------------------------------

def decoder_forward(s, pk, *, capacity, depth):
    C = capacity
    s2 = jnp.asarray(s, jnp.float32).reshape(-1, 49)
    B = s2.shape[0]
    R = B * 64

    # embed: relu(Linear) laid out as zero-padded (B*64, C) NHWC (XLA glue).
    emb = jnp.maximum(s2 @ pk['embed_w_pc'], 0.0).reshape(B, 7, 7, C)
    x0 = jnp.pad(emb, ((0, 0), (0, 1), (0, 1), (0, 0))).reshape(R, C)

    # validity mask, pre-broadcast to (R, C) so the kernel never re-issues the
    # (R,1)->(R,C) lane broadcast inside the depth loop.
    m = np.zeros((8, 8), np.float32)
    m[:7, :7] = 1.0
    mask = jnp.asarray(np.tile(m.reshape(64, 1), (B, C)))            # (R, C)

    dbias = jnp.tile(pk['dbias64'], (B, 1))                          # (R, 16)

    # All-resident weights: 2*depth*(3C)^2 bf16 bytes; above ~C=128/depth=51 on
    # v7x (64 MiB physical VMEM) switch to a grid=(depth,) streaming variant.
    weight_bytes = 2 * depth * (3 * C) * (3 * C) * 2
    vmem_limit = int(min(max(4 * weight_bytes, 32 * 1024 * 1024),
                         56 * 1024 * 1024))

    kernel = _make_decoder_kernel(B, C, depth)
    y = pl.pallas_call(
        kernel,
        out_shape=jax.ShapeDtypeStruct((R, 16), jnp.float32),
        compiler_params=pltpu.CompilerParams(vmem_limit_bytes=vmem_limit),
    )(x0, mask, pk['c1w'], pk['c1b'], pk['g1'], pk['be1'],
      pk['c2w'], pk['c2b'], pk['g2'], pk['be2'], pk['dw'], dbias)

    # un-interleave the 4x4 deconv sub-blocks into the 28x28 image (NCHW out).
    img = (y.reshape(B, 8, 8, 4, 4)[:, :7, :7]
           .transpose(0, 1, 3, 2, 4).reshape(B, 28, 28)[:, None, :, :])
    return img


# ----------------------------- f32 reference --------------------------------

def reference_forward(s, p, *, capacity, depth):
    """Pure-JAX f32 re-implementation of the PyTorch module (train-mode BN)."""
    C = capacity
    s2 = jnp.asarray(s, jnp.float32).reshape(-1, 49)
    B = s2.shape[0]
    x = jnp.maximum(s2 @ p['embed_w'].T, 0.0).reshape(B, C, 7, 7)

    def conv(x, w, b):
        y = lax.conv_general_dilated(x, w, (1, 1), ((1, 1), (1, 1)),
                                     dimension_numbers=('NCHW', 'OIHW', 'NCHW'))
        return y + b.reshape(1, C, 1, 1)

    def bn(x, g, be):
        mean = jnp.mean(x, axis=(0, 2, 3), keepdims=True)
        var = jnp.mean((x - mean) ** 2, axis=(0, 2, 3), keepdims=True)
        return ((x - mean) * lax.rsqrt(var + BN_EPS) * g.reshape(1, C, 1, 1)
                + be.reshape(1, C, 1, 1))

    for d in range(depth):
        h = jnp.maximum(bn(conv(x, p['conv1_w'][d], p['conv1_b'][d]),
                           p['bn1_g'][d], p['bn1_b'][d]), 0.0)
        h = bn(conv(h, p['conv2_w'][d], p['conv2_b'][d]),
               p['bn2_g'][d], p['bn2_b'][d])
        x = jnp.maximum(h + x, 0.0)

    w = p['deconv_w'].reshape(C, 4, 4)
    z = (jnp.einsum('bchw,ckl->bhkwl', x, w).reshape(B, 28, 28)
         + p['deconv_b'] + p['bias28'][None])
    return (1.0 / (1.0 + jnp.exp(-z)))[:, None]


if __name__ == "__main__":
    B, capacity, depth = 2, 32, 3     # module defaults: capacity=32, depth=51
    key = jax.random.PRNGKey(0)
    k_in, k_par = jax.random.split(key)
    s = jax.random.normal(k_in, (B, 49), jnp.float32)
    params = init_params(k_par, capacity, depth)
    packed = pack_params(params, capacity=capacity, depth=depth)

    out = decoder_forward(s, packed, capacity=capacity, depth=depth)
    out = jax.block_until_ready(out)

    assert out.shape == (B, 1, 28, 28), out.shape
    assert bool(jnp.all(jnp.isfinite(out)))
    # sigmoid range (approx-reciprocal epilogue may overshoot 1.0 by ~2^-12)
    assert bool(jnp.all((out >= 0.0) & (out <= 1.0 + 1e-3)))

    # sanity vs. pure-JAX f32 reference (bf16 matmuls + approx recip tolerance)
    ref = reference_forward(s, params, capacity=capacity, depth=depth)
    err = float(jnp.max(jnp.abs(out - ref)))
    assert err < 5e-3, f"max |kernel - f32 reference| = {err}"

    print("KERNEL_OK")
</pallas_src>

<mosaic_0001>
module attributes {stable_mosaic.version = 11 : i64} {
  func.func @kernel(%arg0: memref<128x32xf32, #tpu.memory_space<vmem>>, %arg1: memref<128x32xf32, #tpu.memory_space<vmem>>, %arg2: memref<3x96x96xbf16, #tpu.memory_space<vmem>>, %arg3: memref<3x1x32xf32, #tpu.memory_space<vmem>>, %arg4: memref<3x1x32xf32, #tpu.memory_space<vmem>>, %arg5: memref<3x1x32xf32, #tpu.memory_space<vmem>>, %arg6: memref<3x96x96xbf16, #tpu.memory_space<vmem>>, %arg7: memref<3x1x32xf32, #tpu.memory_space<vmem>>, %arg8: memref<3x1x32xf32, #tpu.memory_space<vmem>>, %arg9: memref<3x1x32xf32, #tpu.memory_space<vmem>>, %arg10: memref<32x16xbf16, #tpu.memory_space<vmem>>, %arg11: memref<128x16xf32, #tpu.memory_space<vmem>>, %arg12: memref<128x16xf32, #tpu.memory_space<vmem>>) attributes {dimension_semantics = [], scalar_prefetch = 0 : i64, scratch_operands = 0 : i64, tpu.core_type = #tpu.core_type<tc>} {
    %c0 = arith.constant 0 : index
    %c0_0 = arith.constant 0 : index
    %0 = vector.load %arg1[%c0, %c0_0] : memref<128x32xf32, #tpu.memory_space<vmem>>, vector<128x32xf32>
    %c0_1 = arith.constant 0 : index
    %c0_2 = arith.constant 0 : index
    %1 = vector.load %arg0[%c0_1, %c0_2] : memref<128x32xf32, #tpu.memory_space<vmem>>, vector<128x32xf32>
    %c0_i32 = arith.constant 0 : i32
    %c3_i32 = arith.constant 3 : i32
    %2 = arith.addi %c0_i32, %c3_i32 : i32
    %c1_i32 = arith.constant 1 : i32
    %3 = scf.for %arg13 = %c0_i32 to %2 step %c1_i32 iter_args(%arg14 = %1) -> (vector<128x32xf32>)  : i32 {
      %16 = arith.index_cast %arg13 : i32 to index
      %c0_12 = arith.constant 0 : index
      %c0_13 = arith.constant 0 : index
      %17 = vector.load %arg2[%16, %c0_12, %c0_13] : memref<3x96x96xbf16, #tpu.memory_space<vmem>>, vector<1x96x96xbf16>
      %18 = vector.shape_cast %17 : vector<1x96x96xbf16> to vector<96x96xbf16>
      %19 = arith.index_cast %arg13 : i32 to index
      %c0_14 = arith.constant 0 : index
      %c0_15 = arith.constant 0 : index
      %20 = vector.load %arg3[%19, %c0_14, %c0_15] : memref<3x1x32xf32, #tpu.memory_space<vmem>>, vector<1x1x32xf32>
      %21 = vector.shape_cast %20 : vector<1x1x32xf32> to vector<1x32xf32>
      %c8_i32 = arith.constant 8 : i32
      %22 = tpu.dynamic_rotate %arg14 by %c8_i32 dim 0 : vector<128x32xf32>, i32 -> vector<128x32xf32>
      %23 = arith.truncf %22 : vector<128x32xf32> to vector<128x32xbf16>
      %24 = arith.truncf %arg14 : vector<128x32xf32> to vector<128x32xbf16>
      %c120_i32 = arith.constant 120 : i32
      %25 = tpu.dynamic_rotate %arg14 by %c120_i32 dim 0 : vector<128x32xf32>, i32 -> vector<128x32xf32>
      %26 = arith.truncf %25 : vector<128x32xf32> to vector<128x32xbf16>
      %27 = tpu.concatenate %23, %24, %26 in 1 : vector<128x32xbf16>, vector<128x32xbf16>, vector<128x32xbf16> -> vector<128x96xbf16>
      %cst_16 = arith.constant dense<0.000000e+00> : vector<128x96xf32>
      %28 = tpu.matmul %27, %18, %cst_16 {dimension_numbers = #tpu.dot_dimension_numbers<[1], [0], [0], [1], [0, 0, 1, 1], [], []>} : vector<128x96xbf16>, vector<96x96xbf16>, vector<128x96xf32> -> vector<128x96xf32>
      %29 = vector.extract_strided_slice %28 {offsets = [0, 32], sizes = [128, 32], strides = [1, 1]} : vector<128x96xf32> to vector<128x32xf32>
      %30 = vector.extract_strided_slice %28 {offsets = [0, 0], sizes = [128, 32], strides = [1, 1]} : vector<128x96xf32> to vector<128x32xf32>
      %c1_i32_17 = arith.constant 1 : i32
      %31 = tpu.dynamic_rotate %30 by %c1_i32_17 dim 0 : vector<128x32xf32>, i32 -> vector<128x32xf32>
      %32 = arith.addf %29, %31 : vector<128x32xf32>
      %33 = vector.extract_strided_slice %28 {offsets = [0, 64], sizes = [128, 32], strides = [1, 1]} : vector<128x96xf32> to vector<128x32xf32>
      %c127_i32 = arith.constant 127 : i32
      %34 = tpu.dynamic_rotate %33 by %c127_i32 dim 0 : vector<128x32xf32>, i32 -> vector<128x32xf32>
      %35 = arith.addf %32, %34 : vector<128x32xf32>
      %36 = vector.broadcast %21 : vector<1x32xf32> to vector<128x32xf32>
      %37 = arith.addf %35, %36 : vector<128x32xf32>
      %38 = arith.index_cast %arg13 : i32 to index
      %c0_18 = arith.constant 0 : index
      %c0_19 = arith.constant 0 : index
      %39 = vector.load %arg4[%38, %c0_18, %c0_19] : memref<3x1x32xf32, #tpu.memory_space<vmem>>, vector<1x1x32xf32>
      %40 = vector.shape_cast %39 : vector<1x1x32xf32> to vector<1x32xf32>
      %41 = arith.index_cast %arg13 : i32 to index
      %c0_20 = arith.constant 0 : index
      %c0_21 = arith.constant 0 : index
      %42 = vector.load %arg5[%41, %c0_20, %c0_21] : memref<3x1x32xf32, #tpu.memory_space<vmem>>, vector<1x1x32xf32>
      %43 = vector.shape_cast %42 : vector<1x1x32xf32> to vector<1x32xf32>
      %44 = arith.mulf %37, %0 : vector<128x32xf32>
      %45 = arith.mulf %44, %44 : vector<128x32xf32>
      %46 = tpu.concatenate %44, %45 in 1 : vector<128x32xf32>, vector<128x32xf32> -> vector<128x64xf32>
      %cst_22 = arith.constant dense<0.000000e+00> : vector<64xf32>
      %47 = vector.multi_reduction <add>, %46, %cst_22 [0] : vector<128x64xf32> to vector<64xf32>
      %48 = vector.shape_cast %47 : vector<64xf32> to vector<1x64xf32>
      %cst_23 = arith.constant 0.0102040814 : f32
      %49 = vector.broadcast %cst_23 : f32 to vector<1x64xf32>
      %50 = arith.mulf %48, %49 : vector<1x64xf32>
      %51 = vector.extract_strided_slice %50 {offsets = [0, 0], sizes = [1, 32], strides = [1, 1]} : vector<1x64xf32> to vector<1x32xf32>
      %52 = vector.extract_strided_slice %50 {offsets = [0, 32], sizes = [1, 32], strides = [1, 1]} : vector<1x64xf32> to vector<1x32xf32>
      %53 = arith.mulf %51, %51 : vector<1x32xf32>
      %54 = arith.subf %52, %53 : vector<1x32xf32>
      %cst_24 = arith.constant 0.000000e+00 : f32
      %55 = vector.broadcast %cst_24 : f32 to vector<1x32xf32>
      %56 = arith.maximumf %54, %55 : vector<1x32xf32>
      %57 = vector.broadcast %51 : vector<1x32xf32> to vector<128x32xf32>
      %58 = arith.subf %37, %57 : vector<128x32xf32>
      %cst_25 = arith.constant 9.99999974E-6 : f32
      %59 = vector.broadcast %cst_25 : f32 to vector<1x32xf32>
      %60 = arith.addf %56, %59 : vector<1x32xf32>
      %61 = math.rsqrt %60 : vector<1x32xf32>
      %62 = arith.mulf %61, %40 : vector<1x32xf32>
      %63 = vector.broadcast %62 : vector<1x32xf32> to vector<128x32xf32>
      %64 = arith.mulf %58, %63 : vector<128x32xf32>
      %65 = vector.broadcast %43 : vector<1x32xf32> to vector<128x32xf32>
      %66 = arith.addf %64, %65 : vector<128x32xf32>
      %cst_26 = arith.constant 0.000000e+00 : f32
      %67 = vector.broadcast %cst_26 : f32 to vector<128x32xf32>
      %68 = arith.maximumf %66, %67 : vector<128x32xf32>
      %69 = arith.mulf %68, %0 : vector<128x32xf32>
      %70 = arith.index_cast %arg13 : i32 to index
      %c0_27 = arith.constant 0 : index
      %c0_28 = arith.constant 0 : index
      %71 = vector.load %arg6[%70, %c0_27, %c0_28] : memref<3x96x96xbf16, #tpu.memory_space<vmem>>, vector<1x96x96xbf16>
      %72 = vector.shape_cast %71 : vector<1x96x96xbf16> to vector<96x96xbf16>
      %73 = arith.index_cast %arg13 : i32 to index
      %c0_29 = arith.constant 0 : index
      %c0_30 = arith.constant 0 : index
      %74 = vector.load %arg7[%73, %c0_29, %c0_30] : memref<3x1x32xf32, #tpu.memory_space<vmem>>, vector<1x1x32xf32>
      %75 = vector.shape_cast %74 : vector<1x1x32xf32> to vector<1x32xf32>
      %c8_i32_31 = arith.constant 8 : i32
      %76 = tpu.dynamic_rotate %69 by %c8_i32_31 dim 0 : vector<128x32xf32>, i32 -> vector<128x32xf32>
      %77 = arith.truncf %76 : vector<128x32xf32> to vector<128x32xbf16>
      %78 = arith.truncf %69 : vector<128x32xf32> to vector<128x32xbf16>
      %c120_i32_32 = arith.constant 120 : i32
      %79 = tpu.dynamic_rotate %69 by %c120_i32_32 dim 0 : vector<128x32xf32>, i32 -> vector<128x32xf32>
      %80 = arith.truncf %79 : vector<128x32xf32> to vector<128x32xbf16>
      %81 = tpu.concatenate %77, %78, %80 in 1 : vector<128x32xbf16>, vector<128x32xbf16>, vector<128x32xbf16> -> vector<128x96xbf16>
      %cst_33 = arith.constant dense<0.000000e+00> : vector<128x96xf32>
      %82 = tpu.matmul %81, %72, %cst_33 {dimension_numbers = #tpu.dot_dimension_numbers<[1], [0], [0], [1], [0, 0, 1, 1], [], []>} : vector<128x96xbf16>, vector<96x96xbf16>, vector<128x96xf32> -> vector<128x96xf32>
      %83 = vector.extract_strided_slice %82 {offsets = [0, 32], sizes = [128, 32], strides = [1, 1]} : vector<128x96xf32> to vector<128x32xf32>
      %84 = vector.extract_strided_slice %82 {offsets = [0, 0], sizes = [128, 32], strides = [1, 1]} : vector<128x96xf32> to vector<128x32xf32>
      %c1_i32_34 = arith.constant 1 : i32
      %85 = tpu.dynamic_rotate %84 by %c1_i32_34 dim 0 : vector<128x32xf32>, i32 -> vector<128x32xf32>
      %86 = arith.addf %83, %85 : vector<128x32xf32>
      %87 = vector.extract_strided_slice %82 {offsets = [0, 64], sizes = [128, 32], strides = [1, 1]} : vector<128x96xf32> to vector<128x32xf32>
      %c127_i32_35 = arith.constant 127 : i32
      %88 = tpu.dynamic_rotate %87 by %c127_i32_35 dim 0 : vector<128x32xf32>, i32 -> vector<128x32xf32>
      %89 = arith.addf %86, %88 : vector<128x32xf32>
      %90 = vector.broadcast %75 : vector<1x32xf32> to vector<128x32xf32>
      %91 = arith.addf %89, %90 : vector<128x32xf32>
      %92 = arith.index_cast %arg13 : i32 to index
      %c0_36 = arith.constant 0 : index
      %c0_37 = arith.constant 0 : index
      %93 = vector.load %arg8[%92, %c0_36, %c0_37] : memref<3x1x32xf32, #tpu.memory_space<vmem>>, vector<1x1x32xf32>
      %94 = vector.shape_cast %93 : vector<1x1x32xf32> to vector<1x32xf32>
      %95 = arith.index_cast %arg13 : i32 to index
      %c0_38 = arith.constant 0 : index
      %c0_39 = arith.constant 0 : index
      %96 = vector.load %arg9[%95, %c0_38, %c0_39] : memref<3x1x32xf32, #tpu.memory_space<vmem>>, vector<1x1x32xf32>
      %97 = vector.shape_cast %96 : vector<1x1x32xf32> to vector<1x32xf32>
      %98 = arith.mulf %91, %0 : vector<128x32xf32>
      %99 = arith.mulf %98, %98 : vector<128x32xf32>
      %100 = tpu.concatenate %98, %99 in 1 : vector<128x32xf32>, vector<128x32xf32> -> vector<128x64xf32>
      %cst_40 = arith.constant dense<0.000000e+00> : vector<64xf32>
      %101 = vector.multi_reduction <add>, %100, %cst_40 [0] : vector<128x64xf32> to vector<64xf32>
      %102 = vector.shape_cast %101 : vector<64xf32> to vector<1x64xf32>
      %cst_41 = arith.constant 0.0102040814 : f32
      %103 = vector.broadcast %cst_41 : f32 to vector<1x64xf32>
      %104 = arith.mulf %102, %103 : vector<1x64xf32>
      %105 = vector.extract_strided_slice %104 {offsets = [0, 0], sizes = [1, 32], strides = [1, 1]} : vector<1x64xf32> to vector<1x32xf32>
      %106 = vector.extract_strided_slice %104 {offsets = [0, 32], sizes = [1, 32], strides = [1, 1]} : vector<1x64xf32> to vector<1x32xf32>
      %107 = arith.mulf %105, %105 : vector<1x32xf32>
      %108 = arith.subf %106, %107 : vector<1x32xf32>
      %cst_42 = arith.constant 0.000000e+00 : f32
      %109 = vector.broadcast %cst_42 : f32 to vector<1x32xf32>
      %110 = arith.maximumf %108, %109 : vector<1x32xf32>
      %111 = vector.broadcast %105 : vector<1x32xf32> to vector<128x32xf32>
      %112 = arith.subf %91, %111 : vector<128x32xf32>
      %cst_43 = arith.constant 9.99999974E-6 : f32
      %113 = vector.broadcast %cst_43 : f32 to vector<1x32xf32>
      %114 = arith.addf %110, %113 : vector<1x32xf32>
      %115 = math.rsqrt %114 : vector<1x32xf32>
      %116 = arith.mulf %115, %94 : vector<1x32xf32>
      %117 = vector.broadcast %116 : vector<1x32xf32> to vector<128x32xf32>
      %118 = arith.mulf %112, %117 : vector<128x32xf32>
      %119 = vector.broadcast %97 : vector<1x32xf32> to vector<128x32xf32>
      %120 = arith.addf %118, %119 : vector<128x32xf32>
      %121 = arith.addf %120, %arg14 : vector<128x32xf32>
      %cst_44 = arith.constant 0.000000e+00 : f32
      %122 = vector.broadcast %cst_44 : f32 to vector<128x32xf32>
      %123 = arith.maximumf %121, %122 : vector<128x32xf32>
      %124 = arith.mulf %123, %0 : vector<128x32xf32>
      scf.yield %124 : vector<128x32xf32>
    }
    %c3_i32_3 = arith.constant 3 : i32
    %4 = arith.truncf %3 : vector<128x32xf32> to vector<128x32xbf16>
    %c0_4 = arith.constant 0 : index
    %c0_5 = arith.constant 0 : index
    %5 = vector.load %arg10[%c0_4, %c0_5] : memref<32x16xbf16, #tpu.memory_space<vmem>>, vector<32x16xbf16>
    %cst = arith.constant dense<0.000000e+00> : vector<128x16xf32>
    %6 = tpu.matmul %4, %5, %cst {dimension_numbers = #tpu.dot_dimension_numbers<[1], [0], [0], [1], [0, 0, 1, 1], [], []>} : vector<128x32xbf16>, vector<32x16xbf16>, vector<128x16xf32> -> vector<128x16xf32>
    %c0_6 = arith.constant 0 : index
    %c0_7 = arith.constant 0 : index
    %7 = vector.load %arg11[%c0_6, %c0_7] : memref<128x16xf32, #tpu.memory_space<vmem>>, vector<128x16xf32>
    %8 = arith.addf %6, %7 : vector<128x16xf32>
    %cst_8 = arith.constant 0.000000e+00 : f32
    %9 = vector.broadcast %cst_8 : f32 to vector<128x16xf32>
    %10 = arith.subf %9, %8 : vector<128x16xf32>
    %11 = math.exp %10 : vector<128x16xf32>
    %cst_9 = arith.constant 1.000000e+00 : f32
    %12 = vector.broadcast %cst_9 : f32 to vector<128x16xf32>
    %13 = arith.addf %12, %11 : vector<128x16xf32>
    %14 = tpu.reciprocal %13 {approx = true} : vector<128x16xf32> -> vector<128x16xf32>
    %c0_10 = arith.constant 0 : index
    %c0_11 = arith.constant 0 : index
    %15 = vector.load %arg12[%c0_10, %c0_11] : memref<128x16xf32, #tpu.memory_space<vmem>>, vector<128x16xf32>
    tpu.vector_store %arg12[%c0_10, %c0_11], %14 {strides = array<i32>} : memref<128x16xf32, #tpu.memory_space<vmem>>, vector<128x16xf32>,
    return
  }
}

</mosaic_0001>

<llo_original>
// kernel: tpu_custom_call.1
$region0: #{tpu_custom_call.1}
  #allocation0 [shape = 'u32[]', space=smem, size = 0x4, offset = 0x4, fixed_abs, tag = 'smem constant byte address 0x4 - core index']
  #allocation1 [shape = 'u32[144,128]{1,0:T(1,128)}', space=vmem, size = 0x12000, scoped, tag = 'internal scratch']
  %s0 = inlined_call_operand.vmem [shape: f32[128,32], index: 0, kind: input, shape index: {}]
  %s1 = inlined_call_operand.vmem [shape: f32[128,32], index: 1, kind: input, shape index: {}]
  %s2 = inlined_call_operand.vmem [shape: bf16[3,96,96], index: 2, kind: input, shape index: {}]
  %s3 = inlined_call_operand.vmem [shape: f32[3,1,32], index: 3, kind: input, shape index: {}]
  %s4 = inlined_call_operand.vmem [shape: f32[3,1,32], index: 4, kind: input, shape index: {}]
  %s5 = inlined_call_operand.vmem [shape: f32[3,1,32], index: 5, kind: input, shape index: {}]
  %s6 = inlined_call_operand.vmem [shape: bf16[3,96,96], index: 6, kind: input, shape index: {}]
  %s7 = inlined_call_operand.vmem [shape: f32[3,1,32], index: 7, kind: input, shape index: {}]
  %s8 = inlined_call_operand.vmem [shape: f32[3,1,32], index: 8, kind: input, shape index: {}]
  %s9 = inlined_call_operand.vmem [shape: f32[3,1,32], index: 9, kind: input, shape index: {}]
  %s10 = inlined_call_operand.vmem [shape: bf16[32,16], index: 10, kind: input, shape index: {}]
  %s11 = inlined_call_operand.vmem [shape: f32[128,16], index: 11, kind: input, shape index: {}]
  %s12 = inlined_call_operand.vmem [shape: f32[128,16], index: 12, kind: output, shape index: {}]
  %s13 = sld [smem:[#allocation0]]
  $region65: #{tpu_custom_call.1} parent=0
    _
  %s15 = ssub.s32 1, %s13
  %s16 = scalar_select 0, %s15, %s13
  // Predicated region
  $region2: #{tpu_custom_call.1} parent=0 // pred_check
    _
  $region3: #{tpu_custom_call.1} parent=0 // pred_check_branch
    %18 = sbr.rel (0) target = $region5
  $region4: #{tpu_custom_call.1} parent=0 // pred_region
    _
  $region5: #{tpu_custom_call.1} parent=0 // pred_fallthru
    _
  // Predicated region
  $region6: #{tpu_custom_call.1} parent=0 // pred_check
    _
  $region7: #{tpu_custom_call.1} parent=0 // pred_check_branch
    %20 = sbr.rel (0) target = $region9
  $region8: #{tpu_custom_call.1} parent=0 // pred_region
    _
  $region9: #{tpu_custom_call.1} parent=0 // pred_fallthru
    _
  // Predicated region
  $region10: #{tpu_custom_call.1} parent=0 // pred_check
    _
  $region11: #{tpu_custom_call.1} parent=0 // pred_check_branch
    %22 = sbr.rel (0) target = $region13
  $region12: #{tpu_custom_call.1} parent=0 // pred_region
    _
  $region13: #{tpu_custom_call.1} parent=0 // pred_fallthru
    _
  // Predicated region
  $region14: #{tpu_custom_call.1} parent=0 // pred_check
    _
  $region15: #{tpu_custom_call.1} parent=0 // pred_check_branch
    %24 = sbr.rel (0) target = $region17
  $region16: #{tpu_custom_call.1} parent=0 // pred_region
    _
  $region17: #{tpu_custom_call.1} parent=0 // pred_fallthru
    _
  // Predicated region
  $region18: #{tpu_custom_call.1} parent=0 // pred_check
    _
  $region19: #{tpu_custom_call.1} parent=0 // pred_check_branch
    %26 = sbr.rel (0) target = $region21
  $region20: #{tpu_custom_call.1} parent=0 // pred_region
    _
  $region21: #{tpu_custom_call.1} parent=0 // pred_fallthru
    _
  // Predicated region
  $region22: #{tpu_custom_call.1} parent=0 // pred_check
    _
  $region23: #{tpu_custom_call.1} parent=0 // pred_check_branch
    %28 = sbr.rel (0) target = $region25
  $region24: #{tpu_custom_call.1} parent=0 // pred_region
    _
  $region25: #{tpu_custom_call.1} parent=0 // pred_fallthru
    _
  // Predicated region
  $region26: #{tpu_custom_call.1} parent=0 // pred_check
    _
  $region27: #{tpu_custom_call.1} parent=0 // pred_check_branch
    %30 = sbr.rel (0) target = $region29
  $region28: #{tpu_custom_call.1} parent=0 // pred_region
    _
  $region29: #{tpu_custom_call.1} parent=0 // pred_fallthru
    _
  // Predicated region
  $region30: #{tpu_custom_call.1} parent=0 // pred_check
    _
  $region31: #{tpu_custom_call.1} parent=0 // pred_check_branch
    %32 = sbr.rel (0) target = $region33
  $region32: #{tpu_custom_call.1} parent=0 // pred_region
    _
  $region33: #{tpu_custom_call.1} parent=0 // pred_fallthru
    _
  // Predicated region
  $region34: #{tpu_custom_call.1} parent=0 // pred_check
    _
  $region35: #{tpu_custom_call.1} parent=0 // pred_check_branch
    %34 = sbr.rel (0) target = $region37
  $region36: #{tpu_custom_call.1} parent=0 // pred_region
    _
  $region37: #{tpu_custom_call.1} parent=0 // pred_fallthru
    _
  // Predicated region
  $region38: #{tpu_custom_call.1} parent=0 // pred_check
    _
  $region39: #{tpu_custom_call.1} parent=0 // pred_check_branch
    %36 = sbr.rel (0) target = $region41
  $region40: #{tpu_custom_call.1} parent=0 // pred_region
    _
  $region41: #{tpu_custom_call.1} parent=0 // pred_fallthru
    _
  // Predicated region
  $region42: #{tpu_custom_call.1} parent=0 // pred_check
    _
  $region43: #{tpu_custom_call.1} parent=0 // pred_check_branch
    %38 = sbr.rel (0) target = $region45
  $region44: #{tpu_custom_call.1} parent=0 // pred_region
    _
  $region45: #{tpu_custom_call.1} parent=0 // pred_fallthru
    _
  // Predicated region
  $region46: #{tpu_custom_call.1} parent=0 // pred_check
    _
  $region47: #{tpu_custom_call.1} parent=0 // pred_check_branch
    %40 = sbr.rel (0) target = $region49
  $region48: #{tpu_custom_call.1} parent=0 // pred_region
    _
  $region49: #{tpu_custom_call.1} parent=0 // pred_fallthru
    _
  %v42 = vld [vmem:[%s1] sm:$0xff]
  %v43 = vld [vmem:[%s1 + $0x8] sm:$0xff]
  %v44 = vld [vmem:[%s1 + $0x10] sm:$0xff]
  %v45 = vld [vmem:[%s1 + $0x18] sm:$0xff]
  %v46 = vld [vmem:[%s1 + $0x20] sm:$0xff]
  %v47 = vld [vmem:[%s1 + $0x28] sm:$0xff]
  %v48 = vld [vmem:[%s1 + $0x30] sm:$0xff]
  %v49 = vld [vmem:[%s1 + $0x38] sm:$0xff]
  %v50 = vld [vmem:[%s1 + $0x40] sm:$0xff]
  %v51 = vld [vmem:[%s1 + $0x48] sm:$0xff]
  %v52 = vld [vmem:[%s1 + $0x50] sm:$0xff]
  %v53 = vld [vmem:[%s1 + $0x58] sm:$0xff]
  %v54 = vld [vmem:[%s1 + $0x60] sm:$0xff]
  %v55 = vld [vmem:[%s1 + $0x68] sm:$0xff]
  %v56 = vld [vmem:[%s1 + $0x70] sm:$0xff]
  %v57 = vld [vmem:[%s1 + $0x78] sm:$0xff]
  %v58 = vld [vmem:[%s0] sm:$0xff]
  %v59 = vld [vmem:[%s0 + $0x8] sm:$0xff]
  %v60 = vld [vmem:[%s0 + $0x10] sm:$0xff]
  %v61 = vld [vmem:[%s0 + $0x18] sm:$0xff]
  %v62 = vld [vmem:[%s0 + $0x20] sm:$0xff]
  %v63 = vld [vmem:[%s0 + $0x28] sm:$0xff]
  %v64 = vld [vmem:[%s0 + $0x30] sm:$0xff]
  %v65 = vld [vmem:[%s0 + $0x38] sm:$0xff]
  %v66 = vld [vmem:[%s0 + $0x40] sm:$0xff]
  %v67 = vld [vmem:[%s0 + $0x48] sm:$0xff]
  %v68 = vld [vmem:[%s0 + $0x50] sm:$0xff]
  %v69 = vld [vmem:[%s0 + $0x58] sm:$0xff]
  %v70 = vld [vmem:[%s0 + $0x60] sm:$0xff]
  %v71 = vld [vmem:[%s0 + $0x68] sm:$0xff]
  %v72 = vld [vmem:[%s0 + $0x70] sm:$0xff]
  %v73 = vld [vmem:[%s0 + $0x78] sm:$0xff]
  loop: start=0, step=1, limit=3
  $region50: #{tpu_custom_call.1} parent=0 // loop_pre_header
    _
  $region51: #{tpu_custom_call.1} parent=0 // loop_header
    %s75 = sphi 0, %s79
    %p76 = scmp.ge.s32.totalorder %s75, 3
    %v80 = vphi %v58, %v2003
    %v81 = vphi %v59, %v2005
    %v82 = vphi %v60, %v2007
    %v83 = vphi %v61, %v2009
    %v84 = vphi %v62, %v2011
    %v85 = vphi %v63, %v2013
    %v86 = vphi %v64, %v2015
    %v87 = vphi %v65, %v2017
    %v88 = vphi %v66, %v2019
    %v89 = vphi %v67, %v2021
    %v90 = vphi %v68, %v2023
    %v91 = vphi %v69, %v2025
    %v92 = vphi %v70, %v2027
    %v93 = vphi %v71, %v2029
    %v94 = vphi %v72, %v2031
    %v95 = vphi %v73, %v2033
  $region52: #{tpu_custom_call.1} parent=0 // loop_header_branch
    %78 = sbr.rel (%p76) target = $region56
  $region53: #{tpu_custom_call.1} parent=0 // loop_body
    %s96 = smul.u32 %s75, 12
    %s97 = smul.addr %s96, 4
    %s98 = scalar_lea.vmem %s2, %s97
    %v99 = vld [vmem:[%s98] sm:$0xf]
    %v100 = vld [vmem:[%s98 + $0x4] sm:$0xf]
    %v101 = vld [vmem:[%s98 + $0x8] sm:$0xf]
    %v102 = vld [vmem:[%s98 + $0xc] sm:$0xf]
    %v103 = vld [vmem:[%s98 + $0x10] sm:$0xf]
    %v104 = vld [vmem:[%s98 + $0x14] sm:$0xf]
    %v105 = vld [vmem:[%s98 + $0x18] sm:$0xf]
    %v106 = vld [vmem:[%s98 + $0x1c] sm:$0xf]
    %v107 = vld [vmem:[%s98 + $0x20] sm:$0xf]
    %v108 = vld [vmem:[%s98 + $0x24] sm:$0xf]
    %v109 = vld [vmem:[%s98 + $0x28] sm:$0xf]
    %v110 = vld [vmem:[%s98 + $0x2c] sm:$0xf]
    %s111 = scalar_lea.vmem %s3, %s75
    %v112 = vld [vmem:[%s111] sm:$0x1]
    %v113 = vpack.c.bf16 %v80, %v95
    %v114 = vpack.c.bf16 %v82, %v81
    %v115 = vpack.c.bf16 %v84, %v83
    %v116 = vpack.c.bf16 %v86, %v85
    %v117 = vpack.c.bf16 %v88, %v87
    %v118 = vpack.c.bf16 %v90, %v89
    %v119 = vpack.c.bf16 %v92, %v91
    %v120 = vpack.c.bf16 %v94, %v93
    %v121 = vpack.c.bf16 %v81, %v80
    %v122 = vpack.c.bf16 %v83, %v82
    %v123 = vpack.c.bf16 %v85, %v84
    %v124 = vpack.c.bf16 %v87, %v86
    %v125 = vpack.c.bf16 %v89, %v88
    %v126 = vpack.c.bf16 %v91, %v90
    %v127 = vpack.c.bf16 %v93, %v92
    %v128 = vpack.c.bf16 %v95, %v94
    %137 = vrot.lane.b32.xlu0 %v121, 32
    %v138 = vpop.permute.xlu0 %137
    %139 = vrot.lane.b32.xlu0 %v122, 32
    %v140 = vpop.permute.xlu0 %139
    %141 = vrot.lane.b32.xlu0 %v123, 32
    %v142 = vpop.permute.xlu0 %141
    %143 = vrot.lane.b32.xlu0 %v124, 32
    %v144 = vpop.permute.xlu0 %143
    %145 = vrot.lane.b32.xlu0 %v125, 32
    %v146 = vpop.permute.xlu0 %145
    %147 = vrot.lane.b32.xlu0 %v126, 32
    %v148 = vpop.permute.xlu0 %147
    %149 = vrot.lane.b32.xlu0 %v127, 32
    %v150 = vpop.permute.xlu0 %149
    %151 = vrot.lane.b32.xlu0 %v128, 32
    %v152 = vpop.permute.xlu0 %151
    %161 = vrot.lane.b32.xlu0 %v114, 64
    %v162 = vpop.permute.xlu0 %161
    %163 = vrot.lane.b32.xlu0 %v115, 64
    %v164 = vpop.permute.xlu0 %163
    %165 = vrot.lane.b32.xlu0 %v116, 64
    %v166 = vpop.permute.xlu0 %165
    %167 = vrot.lane.b32.xlu0 %v117, 64
    %v168 = vpop.permute.xlu0 %167
    %169 = vrot.lane.b32.xlu0 %v118, 64
    %v170 = vpop.permute.xlu0 %169
    %171 = vrot.lane.b32.xlu0 %v119, 64
    %v172 = vpop.permute.xlu0 %171
    %173 = vrot.lane.b32.xlu0 %v120, 64
    %v174 = vpop.permute.xlu0 %173
    %175 = vrot.lane.b32.xlu0 %v113, 64
    %v176 = vpop.permute.xlu0 %175
    %vm177 = vcmask 261120
    %v180 = vsel %vm177, %v113, %v138
    %v183 = vsel %vm177, %v114, %v140
    %v186 = vsel %vm177, %v115, %v142
    %v189 = vsel %vm177, %v116, %v144
    %v192 = vsel %vm177, %v117, %v146
    %v195 = vsel %vm177, %v118, %v148
    %v198 = vsel %vm177, %v119, %v150
    %v201 = vsel %vm177, %v120, %v152
    %vm202 = vcmask 523264
    %v204 = vsel %vm202, %v180, %v162
    %v206 = vsel %vm202, %v183, %v164
    %v208 = vsel %vm202, %v186, %v166
    %v210 = vsel %vm202, %v189, %v168
    %v212 = vsel %vm202, %v192, %v170
    %v214 = vsel %vm202, %v195, %v172
    %v216 = vsel %vm202, %v198, %v174
    %v218 = vsel %vm202, %v201, %v176
    %v231 = vunpack.c.l.b16 %v99
    %v232 = vunpack.c.l.b16 %v100
    %v233 = vunpack.c.l.b16 %v101
    %v234 = vunpack.c.l.b16 %v102
    %v235 = vunpack.c.l.b16 %v103
    %v236 = vunpack.c.l.b16 %v104
    %v237 = vunpack.c.l.b16 %v105
    %v238 = vunpack.c.l.b16 %v106
    %v239 = vunpack.c.l.b16 %v107
    %v240 = vunpack.c.l.b16 %v108
    %v241 = vunpack.c.l.b16 %v109
    %v242 = vunpack.c.l.b16 %v110
    %v243 = vpack.c.b16 %v232, %v231
    %v244 = vpack.c.b16 %v234, %v233
    %v245 = vpack.c.b16 %v236, %v235
    %v246 = vpack.c.b16 %v238, %v237
    %v247 = vpack.c.b16 %v240, %v239
    %v248 = vpack.c.b16 %v242, %v241
    %vm255 = vcmask 785408
    %v256 = vsel %vm255, %v204, 0
    %v258 = vsel %vm255, %v206, 0
    %v260 = vsel %vm255, %v208, 0
    %v262 = vsel %vm255, %v210, 0
    %v264 = vsel %vm255, %v212, 0
    %v266 = vsel %vm255, %v214, 0
    %v268 = vsel %vm255, %v216, 0
    %v270 = vsel %vm255, %v218, 0
    %272 = vmatprep.subr.bf16.mxu0 0
    %273 = vmatpush1.bf16.msra.mxu0 0
    %274 = vmatprep.subr.bf16.mxu0 0
    %275 = vmatpush1.bf16.msra.mxu0 0
    %276 = vmatprep.subr.bf16.mxu0 0
    %277 = vmatpush1.bf16.msra.mxu0 %v248
    %278 = vmatprep.subr.bf16.mxu0 0
    %279 = vmatpush1.bf16.msra.mxu0 %v247
    %280 = vmatprep.subr.bf16.mxu0 0
    %281 = vmatpush1.bf16.msra.mxu0 %v246
    %282 = vmatprep.subr.bf16.mxu0 0
    %283 = vmatpush1.bf16.msra.mxu0 %v245
    %284 = vmatprep.subr.bf16.mxu0 0
    %285 = vmatpush1.bf16.msra.mxu0 %v244
    %286 = vmatprep.subr.bf16.mxu0 0
    %287 = vmatpush1.bf16.msra.mxu0 %v243
    %288 = vmatprep.subr.bf16.mxu0 0
    %289 = vmatpush2.bf16.msra.mxu0 0
    %290 = vmatprep.subr.bf16.mxu0 0
    %291 = vmatpush2.bf16.msra.mxu0 0
    %292 = vmatprep.subr.bf16.mxu0 0
    %293 = vmatpush2.bf16.msra.mxu0 0
    %294 = vmatprep.subr.bf16.mxu0 0
    %295 = vmatpush2.bf16.msra.mxu0 0
    %296 = vmatprep.subr.bf16.mxu0 0
    %297 = vmatpush2.bf16.msra.mxu0 0
    %298 = vmatprep.subr.bf16.mxu0 0
    %299 = vmatpush2.bf16.msra.mxu0 0
    %300 = vmatprep.subr.bf16.mxu0 0
    %301 = vmatpush2.bf16.msra.mxu0 0
    %302 = vmatprep.subr.bf16.mxu0 0
    %303 = vmatpush2.bf16.msra.mxu0 0
    %304 = vmatprep.mubr.bf16.mxu0 0
    %305 = vmatmul.mubr.bf16.gmra.mxu0 %v256
    %v306 = vpop.f32.mrf.mxu0
    %v307 = vadd.f32 0.0, %v306
    %v308 = vpop.f32.mrf.mxu0
    %v309 = vpop.f32.mrf.mxu0
    %v310 = vadd.f32 0.0, %v309
    %v311 = vpop.f32.mrf.mxu0
    %312 = vmatprep.mubr.bf16.mxu0 0
    %313 = vmatmul.mubr.bf16.gmra.mxu0 %v258
    %v314 = vpop.f32.mrf.mxu0
    %v315 = vadd.f32 0.0, %v314
    %v316 = vpop.f32.mrf.mxu0
    %v317 = vpop.f32.mrf.mxu0
    %v318 = vadd.f32 0.0, %v317
    %v319 = vpop.f32.mrf.mxu0
    %320 = vmatprep.mubr.bf16.mxu0 0
    %321 = vmatmul.mubr.bf16.gmra.mxu0 %v260
    %v322 = vpop.f32.mrf.mxu0
    %v323 = vadd.f32 0.0, %v322
    %v324 = vpop.f32.mrf.mxu0
    %v325 = vpop.f32.mrf.mxu0
    %v326 = vadd.f32 0.0, %v325
    %v327 = vpop.f32.mrf.mxu0
    %328 = vmatprep.mubr.bf16.mxu0 0
    %329 = vmatmul.mubr.bf16.gmra.mxu0 %v262
    %v330 = vpop.f32.mrf.mxu0
    %v331 = vadd.f32 0.0, %v330
    %v332 = vpop.f32.mrf.mxu0
    %v333 = vpop.f32.mrf.mxu0
    %v334 = vadd.f32 0.0, %v333
    %v335 = vpop.f32.mrf.mxu0
    %336 = vmatprep.mubr.bf16.mxu0 0
    %337 = vmatmul.mubr.bf16.gmra.mxu0 %v264
    %v338 = vpop.f32.mrf.mxu0
    %v339 = vadd.f32 0.0, %v338
    %v340 = vpop.f32.mrf.mxu0
    %v341 = vpop.f32.mrf.mxu0
    %v342 = vadd.f32 0.0, %v341
    %v343 = vpop.f32.mrf.mxu0
    %344 = vmatprep.mubr.bf16.mxu0 0
    %345 = vmatmul.mubr.bf16.gmra.mxu0 %v266
    %v346 = vpop.f32.mrf.mxu0
    %v347 = vadd.f32 0.0, %v346
    %v348 = vpop.f32.mrf.mxu0
    %v349 = vpop.f32.mrf.mxu0
    %v350 = vadd.f32 0.0, %v349
    %v351 = vpop.f32.mrf.mxu0
    %352 = vmatprep.mubr.bf16.mxu0 0
    %353 = vmatmul.mubr.bf16.gmra.mxu0 %v268
    %v354 = vpop.f32.mrf.mxu0
    %v355 = vadd.f32 0.0, %v354
    %v356 = vpop.f32.mrf.mxu0
    %v357 = vpop.f32.mrf.mxu0
    %v358 = vadd.f32 0.0, %v357
    %v359 = vpop.f32.mrf.mxu0
    %360 = vmatprep.mubr.bf16.mxu0 0
    %361 = vmatmul.mubr.bf16.gmra.mxu0 %v270
    %v362 = vpop.f32.mrf.mxu0
    %v363 = vadd.f32 0.0, %v362
    %v364 = vpop.f32.mrf.mxu0
    %v365 = vpop.f32.mrf.mxu0
    %v366 = vadd.f32 0.0, %v365
    %v367 = vpop.f32.mrf.mxu0
    %368 = vdwg.mxu0
    %v369 = vrot.slane %v307, 7
    %v370 = vrot.slane %v310, 7
    %v371 = vrot.slane %v315, 7
    %v372 = vrot.slane %v318, 7
    %v373 = vrot.slane %v323, 7
    %v374 = vrot.slane %v326, 7
    %v375 = vrot.slane %v331, 7
    %v376 = vrot.slane %v334, 7
    %v377 = vrot.slane %v339, 7
    %v378 = vrot.slane %v342, 7
    %v379 = vrot.slane %v347, 7
    %v380 = vrot.slane %v350, 7
    %v381 = vrot.slane %v355, 7
    %v382 = vrot.slane %v358, 7
    %v383 = vrot.slane %v363, 7
    %v384 = vrot.slane %v366, 7
    %v385 = vlaneseq
    %v386 = vshrl.u32 %v385, 7
    %vm387 = vcmp.lt.s32.totalorder %v386, 1
    %v388 = vsel %vm387, %v383, %v384
    %v389 = vsel %vm387, %v382, %v383
    %v390 = vsel %vm387, %v381, %v382
    %v391 = vsel %vm387, %v380, %v381
    %v392 = vsel %vm387, %v379, %v380
    %v393 = vsel %vm387, %v378, %v379
    %v394 = vsel %vm387, %v377, %v378
    %v395 = vsel %vm387, %v376, %v377
    %v396 = vsel %vm387, %v375, %v376
    %v397 = vsel %vm387, %v374, %v375
    %v398 = vsel %vm387, %v373, %v374
    %v399 = vsel %vm387, %v372, %v373
    %v400 = vsel %vm387, %v371, %v372
    %v401 = vsel %vm387, %v370, %v371
    %v402 = vsel %vm387, %v369, %v370
    %v403 = vsel %vm387, %v384, %v369
    %420 = vrot.lane.b32.xlu0 %v403, 32
    %v421 = vpop.permute.xlu0 %420
    %422 = vrot.lane.b32.xlu0 %v402, 32
    %v423 = vpop.permute.xlu0 %422
    %424 = vrot.lane.b32.xlu0 %v401, 32
    %v425 = vpop.permute.xlu0 %424
    %426 = vrot.lane.b32.xlu0 %v400, 32
    %v427 = vpop.permute.xlu0 %426
    %428 = vrot.lane.b32.xlu0 %v399, 32
    %v429 = vpop.permute.xlu0 %428
    %430 = vrot.lane.b32.xlu0 %v398, 32
    %v431 = vpop.permute.xlu0 %430
    %432 = vrot.lane.b32.xlu0 %v397, 32
    %v433 = vpop.permute.xlu0 %432
    %434 = vrot.lane.b32.xlu0 %v396, 32
    %v435 = vpop.permute.xlu0 %434
    %436 = vrot.lane.b32.xlu0 %v395, 32
    %v437 = vpop.permute.xlu0 %436
    %438 = vrot.lane.b32.xlu0 %v394, 32
    %v439 = vpop.permute.xlu0 %438
    %440 = vrot.lane.b32.xlu0 %v393, 32
    %v441 = vpop.permute.xlu0 %440
    %442 = vrot.lane.b32.xlu0 %v392, 32
    %v443 = vpop.permute.xlu0 %442
    %444 = vrot.lane.b32.xlu0 %v391, 32
    %v445 = vpop.permute.xlu0 %444
    %446 = vrot.lane.b32.xlu0 %v390, 32
    %v447 = vpop.permute.xlu0 %446
    %448 = vrot.lane.b32.xlu0 %v389, 32
    %v449 = vpop.permute.xlu0 %448
    %450 = vrot.lane.b32.xlu0 %v388, 32
    %v451 = vpop.permute.xlu0 %450
    %v468 = vadd.f32 %v307, %v421
    %v469 = vadd.f32 %v310, %v423
    %v470 = vadd.f32 %v315, %v425
    %v471 = vadd.f32 %v318, %v427
    %v472 = vadd.f32 %v323, %v429
    %v473 = vadd.f32 %v326, %v431
    %v474 = vadd.f32 %v331, %v433
    %v475 = vadd.f32 %v334, %v435
    %v476 = vadd.f32 %v339, %v437
    %v477 = vadd.f32 %v342, %v439
    %v478 = vadd.f32 %v347, %v441
    %v479 = vadd.f32 %v350, %v443
    %v480 = vadd.f32 %v355, %v445
    %v481 = vadd.f32 %v358, %v447
    %v482 = vadd.f32 %v363, %v449
    %v483 = vadd.f32 %v366, %v451
    %500 = vrot.lane.b32.xlu0 %v307, 64
    %v501 = vpop.permute.xlu0 %500
    %502 = vrot.lane.b32.xlu0 %v310, 64
    %v503 = vpop.permute.xlu0 %502
    %504 = vrot.lane.b32.xlu0 %v315, 64
    %v505 = vpop.permute.xlu0 %504
    %506 = vrot.lane.b32.xlu0 %v318, 64
    %v507 = vpop.permute.xlu0 %506
    %508 = vrot.lane.b32.xlu0 %v323, 64
    %v509 = vpop.permute.xlu0 %508
    %510 = vrot.lane.b32.xlu0 %v326, 64
    %v511 = vpop.permute.xlu0 %510
    %512 = vrot.lane.b32.xlu0 %v331, 64
    %v513 = vpop.permute.xlu0 %512
    %514 = vrot.lane.b32.xlu0 %v334, 64
    %v515 = vpop.permute.xlu0 %514
    %516 = vrot.lane.b32.xlu0 %v339, 64
    %v517 = vpop.permute.xlu0 %516
    %518 = vrot.lane.b32.xlu0 %v342, 64
    %v519 = vpop.permute.xlu0 %518
    %520 = vrot.lane.b32.xlu0 %v347, 64
    %v521 = vpop.permute.xlu0 %520
    %522 = vrot.lane.b32.xlu0 %v350, 64
    %v523 = vpop.permute.xlu0 %522
    %524 = vrot.lane.b32.xlu0 %v355, 64
    %v525 = vpop.permute.xlu0 %524
    %526 = vrot.lane.b32.xlu0 %v358, 64
    %v527 = vpop.permute.xlu0 %526
    %528 = vrot.lane.b32.xlu0 %v363, 64
    %v529 = vpop.permute.xlu0 %528
    %530 = vrot.lane.b32.xlu0 %v366, 64
    %v531 = vpop.permute.xlu0 %530
    %v548 = vrot.slane %v501, 1
    %v549 = vrot.slane %v503, 1
    %v550 = vrot.slane %v505, 1
    %v551 = vrot.slane %v507, 1
    %v552 = vrot.slane %v509, 1
    %v553 = vrot.slane %v511, 1
    %v554 = vrot.slane %v513, 1
    %v555 = vrot.slane %v515, 1
    %v556 = vrot.slane %v517, 1
    %v557 = vrot.slane %v519, 1
    %v558 = vrot.slane %v521, 1
    %v559 = vrot.slane %v523, 1
    %v560 = vrot.slane %v525, 1
    %v561 = vrot.slane %v527, 1
    %v562 = vrot.slane %v529, 1
    %v563 = vrot.slane %v531, 1
    %vm564 = vcmp.lt.s32.totalorder %v386, 7
    %v565 = vsel %vm564, %v562, %v563
    %v566 = vsel %vm564, %v561, %v562
    %v567 = vsel %vm564, %v560, %v561
    %v568 = vsel %vm564, %v559, %v560
    %v569 = vsel %vm564, %v558, %v559
    %v570 = vsel %vm564, %v557, %v558
    %v571 = vsel %vm564, %v556, %v557
    %v572 = vsel %vm564, %v555, %v556
    %v573 = vsel %vm564, %v554, %v555
    %v574 = vsel %vm564, %v553, %v554
    %v575 = vsel %vm564, %v552, %v553
    %v576 = vsel %vm564, %v551, %v552
    %v577 = vsel %vm564, %v550, %v551
    %v578 = vsel %vm564, %v549, %v550
    %v579 = vsel %vm564, %v548, %v549
    %v580 = vsel %vm564, %v563, %v548
    %597 = vrot.lane.b32.xlu0 %v579, 32
    %v598 = vpop.permute.xlu0 %597
    %599 = vrot.lane.b32.xlu0 %v578, 32
    %v600 = vpop.permute.xlu0 %599
    %601 = vrot.lane.b32.xlu0 %v577, 32
    %v602 = vpop.permute.xlu0 %601
    %603 = vrot.lane.b32.xlu0 %v576, 32
    %v604 = vpop.permute.xlu0 %603
    %605 = vrot.lane.b32.xlu0 %v575, 32
    %v606 = vpop.permute.xlu0 %605
    %607 = vrot.lane.b32.xlu0 %v574, 32
    %v608 = vpop.permute.xlu0 %607
    %609 = vrot.lane.b32.xlu0 %v573, 32
    %v610 = vpop.permute.xlu0 %609
    %611 = vrot.lane.b32.xlu0 %v572, 32
    %v612 = vpop.permute.xlu0 %611
    %613 = vrot.lane.b32.xlu0 %v571, 32
    %v614 = vpop.permute.xlu0 %613
    %615 = vrot.lane.b32.xlu0 %v570, 32
    %v616 = vpop.permute.xlu0 %615
    %617 = vrot.lane.b32.xlu0 %v569, 32
    %v618 = vpop.permute.xlu0 %617
    %619 = vrot.lane.b32.xlu0 %v568, 32
    %v620 = vpop.permute.xlu0 %619
    %621 = vrot.lane.b32.xlu0 %v567, 32
    %v622 = vpop.permute.xlu0 %621
    %623 = vrot.lane.b32.xlu0 %v566, 32
    %v624 = vpop.permute.xlu0 %623
    %625 = vrot.lane.b32.xlu0 %v565, 32
    %v626 = vpop.permute.xlu0 %625
    %627 = vrot.lane.b32.xlu0 %v580, 32
    %v628 = vpop.permute.xlu0 %627
    %v645 = vadd.f32 %v468, %v598
    %v646 = vadd.f32 %v469, %v600
    %v647 = vadd.f32 %v470, %v602
    %v648 = vadd.f32 %v471, %v604
    %v649 = vadd.f32 %v472, %v606
    %v650 = vadd.f32 %v473, %v608
    %v651 = vadd.f32 %v474, %v610
    %v652 = vadd.f32 %v475, %v612
    %v653 = vadd.f32 %v476, %v614
    %v654 = vadd.f32 %v477, %v616
    %v655 = vadd.f32 %v478, %v618
    %v656 = vadd.f32 %v479, %v620
    %v657 = vadd.f32 %v480, %v622
    %v658 = vadd.f32 %v481, %v624
    %v659 = vadd.f32 %v482, %v626
    %v660 = vadd.f32 %v483, %v628
    %v662 = vlaneseq
    %v663 = vshrl.u32 %v662, 7
    %v664 = vsub.s32 0, %v663
    %v665 = vrot.slane %v112, %v664
    %666 = vrot.lane.b32.xlu0 %v665, 32
    %v667 = vpop.permute.xlu0 %666
    %v669 = vadd.f32 %v645, %v667
    %v670 = vadd.f32 %v646, %v667
    %v671 = vadd.f32 %v647, %v667
    %v672 = vadd.f32 %v648, %v667
    %v673 = vadd.f32 %v649, %v667
    %v674 = vadd.f32 %v650, %v667
    %v675 = vadd.f32 %v651, %v667
    %v676 = vadd.f32 %v652, %v667
    %v677 = vadd.f32 %v653, %v667
    %v678 = vadd.f32 %v654, %v667
    %v679 = vadd.f32 %v655, %v667
    %v680 = vadd.f32 %v656, %v667
    %v681 = vadd.f32 %v657, %v667
    %v682 = vadd.f32 %v658, %v667
    %v683 = vadd.f32 %v659, %v667
    %v684 = vadd.f32 %v660, %v667
    %s685 = scalar_lea.vmem %s4, %s75
    %v686 = vld [vmem:[%s685] sm:$0x1]
    %s687 = scalar_lea.vmem %s5, %s75
    %v688 = vld [vmem:[%s687] sm:$0x1]
    %705 = vrot.lane.b32.xlu0 %v42, 32
    %v706 = vpop.permute.xlu0 %705
    %707 = vrot.lane.b32.xlu0 %v43, 32
    %v708 = vpop.permute.xlu0 %707
    %709 = vrot.lane.b32.xlu0 %v44, 32
    %v710 = vpop.permute.xlu0 %709
    %711 = vrot.lane.b32.xlu0 %v45, 32
    %v712 = vpop.permute.xlu0 %711
    %713 = vrot.lane.b32.xlu0 %v46, 32
    %v714 = vpop.permute.xlu0 %713
    %715 = vrot.lane.b32.xlu0 %v47, 32
    %v716 = vpop.permute.xlu0 %715
    %717 = vrot.lane.b32.xlu0 %v48, 32
    %v718 = vpop.permute.xlu0 %717
    %719 = vrot.lane.b32.xlu0 %v49, 32
    %v720 = vpop.permute.xlu0 %719
    %721 = vrot.lane.b32.xlu0 %v50, 32
    %v722 = vpop.permute.xlu0 %721
    %723 = vrot.lane.b32.xlu0 %v51, 32
    %v724 = vpop.permute.xlu0 %723
    %725 = vrot.lane.b32.xlu0 %v52, 32
    %v726 = vpop.permute.xlu0 %725
    %727 = vrot.lane.b32.xlu0 %v53, 32
    %v728 = vpop.permute.xlu0 %727
    %729 = vrot.lane.b32.xlu0 %v54, 32
    %v730 = vpop.permute.xlu0 %729
    %731 = vrot.lane.b32.xlu0 %v55, 32
    %v732 = vpop.permute.xlu0 %731
    %733 = vrot.lane.b32.xlu0 %v56, 32
    %v734 = vpop.permute.xlu0 %733
    %735 = vrot.lane.b32.xlu0 %v57, 32
    %v736 = vpop.permute.xlu0 %735
    %v753 = vmul.f32 %v669, %v706
    %v754 = vmul.f32 %v670, %v708
    %v755 = vmul.f32 %v671, %v710
    %v756 = vmul.f32 %v672, %v712
    %v757 = vmul.f32 %v673, %v714
    %v758 = vmul.f32 %v674, %v716
    %v759 = vmul.f32 %v675, %v718
    %v760 = vmul.f32 %v676, %v720
    %v761 = vmul.f32 %v677, %v722
    %v762 = vmul.f32 %v678, %v724
    %v763 = vmul.f32 %v679, %v726
    %v764 = vmul.f32 %v680, %v728
    %v765 = vmul.f32 %v681, %v730
    %v766 = vmul.f32 %v682, %v732
    %v767 = vmul.f32 %v683, %v734
    %v768 = vmul.f32 %v684, %v736
    %v769 = vmul.f32 %v753, %v753
    %v770 = vmul.f32 %v754, %v754
    %v771 = vmul.f32 %v755, %v755
    %v772 = vmul.f32 %v756, %v756
    %v773 = vmul.f32 %v757, %v757
    %v774 = vmul.f32 %v758, %v758
    %v775 = vmul.f32 %v759, %v759
    %v776 = vmul.f32 %v760, %v760
    %v777 = vmul.f32 %v761, %v761
    %v778 = vmul.f32 %v762, %v762
    %v779 = vmul.f32 %v763, %v763
    %v780 = vmul.f32 %v764, %v764
    %v781 = vmul.f32 %v765, %v765
    %v782 = vmul.f32 %v766, %v766
    %v783 = vmul.f32 %v767, %v767
    %v784 = vmul.f32 %v768, %v768
    %801 = vrot.lane.b32.xlu0 %v753, 96
    %v802 = vpop.permute.xlu0 %801
    %803 = vrot.lane.b32.xlu0 %v754, 96
    %v804 = vpop.permute.xlu0 %803
    %805 = vrot.lane.b32.xlu0 %v755, 96
    %v806 = vpop.permute.xlu0 %805
    %807 = vrot.lane.b32.xlu0 %v756, 96
    %v808 = vpop.permute.xlu0 %807
    %809 = vrot.lane.b32.xlu0 %v757, 96
    %v810 = vpop.permute.xlu0 %809
    %811 = vrot.lane.b32.xlu0 %v758, 96
    %v812 = vpop.permute.xlu0 %811
    %813 = vrot.lane.b32.xlu0 %v759, 96
    %v814 = vpop.permute.xlu0 %813
    %815 = vrot.lane.b32.xlu0 %v760, 96
    %v816 = vpop.permute.xlu0 %815
    %817 = vrot.lane.b32.xlu0 %v761, 96
    %v818 = vpop.permute.xlu0 %817
    %819 = vrot.lane.b32.xlu0 %v762, 96
    %v820 = vpop.permute.xlu0 %819
    %821 = vrot.lane.b32.xlu0 %v763, 96
    %v822 = vpop.permute.xlu0 %821
    %823 = vrot.lane.b32.xlu0 %v764, 96
    %v824 = vpop.permute.xlu0 %823
    %825 = vrot.lane.b32.xlu0 %v765, 96
    %v826 = vpop.permute.xlu0 %825
    %827 = vrot.lane.b32.xlu0 %v766, 96
    %v828 = vpop.permute.xlu0 %827
    %829 = vrot.lane.b32.xlu0 %v767, 96
    %v830 = vpop.permute.xlu0 %829
    %831 = vrot.lane.b32.xlu0 %v768, 96
    %v832 = vpop.permute.xlu0 %831
    %v849 = vsel %vm177, %v802, %v769
    %v850 = vsel %vm177, %v804, %v770
    %v851 = vsel %vm177, %v806, %v771
    %v852 = vsel %vm177, %v808, %v772
    %v853 = vsel %vm177, %v810, %v773
    %v854 = vsel %vm177, %v812, %v774
    %v855 = vsel %vm177, %v814, %v775
    %v856 = vsel %vm177, %v816, %v776
    %v857 = vsel %vm177, %v818, %v777
    %v858 = vsel %vm177, %v820, %v778
    %v859 = vsel %vm177, %v822, %v779
    %v860 = vsel %vm177, %v824, %v780
    %v861 = vsel %vm177, %v826, %v781
    %v862 = vsel %vm177, %v828, %v782
    %v863 = vsel %vm177, %v830, %v783
    %v864 = vsel %vm177, %v832, %v784
    %v865 = vsel %vm202, %v849, 0.0
    %v866 = vsel %vm202, %v850, 0.0
    %v867 = vadd.f32 %v865, %v866
    %v868 = vsel %vm202, %v851, 0.0
    %v869 = vadd.f32 %v867, %v868
    %v870 = vsel %vm202, %v852, 0.0
    %v871 = vadd.f32 %v869, %v870
    %v872 = vsel %vm202, %v853, 0.0
    %v873 = vadd.f32 %v871, %v872
    %v874 = vsel %vm202, %v854, 0.0
    %v875 = vadd.f32 %v873, %v874
    %v876 = vsel %vm202, %v855, 0.0
    %v877 = vadd.f32 %v875, %v876
    %v878 = vsel %vm202, %v856, 0.0
    %v879 = vadd.f32 %v877, %v878
    %v880 = vsel %vm202, %v857, 0.0
    %v881 = vadd.f32 %v879, %v880
    %v882 = vsel %vm202, %v858, 0.0
    %v883 = vadd.f32 %v881, %v882
    %v884 = vsel %vm202, %v859, 0.0
    %v885 = vadd.f32 %v883, %v884
    %v886 = vsel %vm202, %v860, 0.0
    %v887 = vadd.f32 %v885, %v886
    %v888 = vsel %vm202, %v861, 0.0
    %v889 = vadd.f32 %v887, %v888
    %v890 = vsel %vm202, %v862, 0.0
    %v891 = vadd.f32 %v889, %v890
    %v892 = vsel %vm202, %v863, 0.0
    %v893 = vadd.f32 %v891, %v892
    %v894 = vsel %vm202, %v864, 0.0
    %v895 = vadd.f32 %v893, %v894
    %v896 = vrot.slane %v895, 4
    %v897 = vadd.f32 %v895, %v896
    %v898 = vrot.slane %v897, 2
    %v899 = vadd.f32 %v897, %v898
    %v900 = vrot.slane %v899, 1
    %v901 = vadd.f32 %v899, %v900
    %v902 = vmul.f32 %v901, 0.010204081
    %v903 = vmul.f32 %v902, %v902
    %905 = vrot.lane.b32.xlu0 %v903, 32
    %v906 = vpop.permute.xlu0 %905
    %v908 = vsub.f32 %v902, %v906
    %v909 = vmax.f32 %v908, 0.0
    %911 = vrot.lane.b32.xlu0 %v902, 32
    %v912 = vpop.permute.xlu0 %911
    %v914 = vsub.f32 %v669, %v912
    %v915 = vsub.f32 %v670, %v912
    %v916 = vsub.f32 %v671, %v912
    %v917 = vsub.f32 %v672, %v912
    %v918 = vsub.f32 %v673, %v912
    %v919 = vsub.f32 %v674, %v912
    %v920 = vsub.f32 %v675, %v912
    %v921 = vsub.f32 %v676, %v912
    %v922 = vsub.f32 %v677, %v912
    %v923 = vsub.f32 %v678, %v912
    %v924 = vsub.f32 %v679, %v912
    %v925 = vsub.f32 %v680, %v912
    %v926 = vsub.f32 %v681, %v912
    %v927 = vsub.f32 %v682, %v912
    %v928 = vsub.f32 %v683, %v912
    %v929 = vsub.f32 %v684, %v912
    %v930 = vadd.f32 %v909, 1e-05
    %v931 = vrsqrt.pop %v930
    %v933 = vlaneseq
    %v934 = vshrl.u32 %v933, 7
    %v935 = vsub.s32 0, %v934
    %v936 = vrot.slane %v686, %v935
    %937 = vrot.lane.b32.xlu0 %v936, 32
    %v938 = vpop.permute.xlu0 %937
    %v940 = vmul.f32 %v931, %v938
    %v941 = vlaneseq
    %v942 = vshrl.u32 %v941, 7
    %v943 = vsub.s32 0, %v942
    %v944 = vrot.slane %v940, %v943
    %v945 = vmul.f32 %v914, %v944
    %v946 = vmul.f32 %v915, %v944
    %v947 = vmul.f32 %v916, %v944
    %v948 = vmul.f32 %v917, %v944
    %v949 = vmul.f32 %v918, %v944
    %v950 = vmul.f32 %v919, %v944
    %v951 = vmul.f32 %v920, %v944
    %v952 = vmul.f32 %v921, %v944
    %v953 = vmul.f32 %v922, %v944
    %v954 = vmul.f32 %v923, %v944
    %v955 = vmul.f32 %v924, %v944
    %v956 = vmul.f32 %v925, %v944
    %v957 = vmul.f32 %v926, %v944
    %v958 = vmul.f32 %v927, %v944
    %v959 = vmul.f32 %v928, %v944
    %v960 = vmul.f32 %v929, %v944
    %v962 = vlaneseq
    %v963 = vshrl.u32 %v962, 7
    %v964 = vsub.s32 0, %v963
    %v965 = vrot.slane %v688, %v964
    %966 = vrot.lane.b32.xlu0 %v965, 32
    %v967 = vpop.permute.xlu0 %966
    %v969 = vadd.f32 %v945, %v967
    %v970 = vadd.f32 %v946, %v967
    %v971 = vadd.f32 %v947, %v967
    %v972 = vadd.f32 %v948, %v967
    %v973 = vadd.f32 %v949, %v967
    %v974 = vadd.f32 %v950, %v967
    %v975 = vadd.f32 %v951, %v967
    %v976 = vadd.f32 %v952, %v967
    %v977 = vadd.f32 %v953, %v967
    %v978 = vadd.f32 %v954, %v967
    %v979 = vadd.f32 %v955, %v967
    %v980 = vadd.f32 %v956, %v967
    %v981 = vadd.f32 %v957, %v967
    %v982 = vadd.f32 %v958, %v967
    %v983 = vadd.f32 %v959, %v967
    %v984 = vadd.f32 %v960, %v967
    %v985 = vmax.f32 %v969, 0.0
    %v986 = vmax.f32 %v970, 0.0
    %v987 = vmax.f32 %v971, 0.0
    %v988 = vmax.f32 %v972, 0.0
    %v989 = vmax.f32 %v973, 0.0
    %v990 = vmax.f32 %v974, 0.0
    %v991 = vmax.f32 %v975, 0.0
    %v992 = vmax.f32 %v976, 0.0
    %v993 = vmax.f32 %v977, 0.0
    %v994 = vmax.f32 %v978, 0.0
    %v995 = vmax.f32 %v979, 0.0
    %v996 = vmax.f32 %v980, 0.0
    %v997 = vmax.f32 %v981, 0.0
    %v998 = vmax.f32 %v982, 0.0
    %v999 = vmax.f32 %v983, 0.0
    %v1000 = vmax.f32 %v984, 0.0
    %v1001 = vmul.f32 %v985, %v706
    %v1002 = vmul.f32 %v986, %v708
    %v1003 = vmul.f32 %v987, %v710
    %v1004 = vmul.f32 %v988, %v712
    %v1005 = vmul.f32 %v989, %v714
    %v1006 = vmul.f32 %v990, %v716
    %v1007 = vmul.f32 %v991, %v718
    %v1008 = vmul.f32 %v992, %v720
    %v1009 = vmul.f32 %v993, %v722
    %v1010 = vmul.f32 %v994, %v724
    %v1011 = vmul.f32 %v995, %v726
    %v1012 = vmul.f32 %v996, %v728
    %v1013 = vmul.f32 %v997, %v730
    %v1014 = vmul.f32 %v998, %v732
    %v1015 = vmul.f32 %v999, %v734
    %v1016 = vmul.f32 %v1000, %v736
    %s1017 = smul.addr %s96, 4
    %s1018 = scalar_lea.vmem %s6, %s1017
    %v1019 = vld [vmem:[%s1018] sm:$0xf]
    %v1020 = vld [vmem:[%s1018 + $0x4] sm:$0xf]
    %v1021 = vld [vmem:[%s1018 + $0x8] sm:$0xf]
    %v1022 = vld [vmem:[%s1018 + $0xc] sm:$0xf]
    %v1023 = vld [vmem:[%s1018 + $0x10] sm:$0xf]
    %v1024 = vld [vmem:[%s1018 + $0x14] sm:$0xf]
    %v1025 = vld [vmem:[%s1018 + $0x18] sm:$0xf]
    %v1026 = vld [vmem:[%s1018 + $0x1c] sm:$0xf]
    %v1027 = vld [vmem:[%s1018 + $0x20] sm:$0xf]
    %v1028 = vld [vmem:[%s1018 + $0x24] sm:$0xf]
    %v1029 = vld [vmem:[%s1018 + $0x28] sm:$0xf]
    %v1030 = vld [vmem:[%s1018 + $0x2c] sm:$0xf]
    %s1031 = scalar_lea.vmem %s7, %s75
    %v1032 = vld [vmem:[%s1031] sm:$0x1]
    %1049 = vrot.lane.b32.xlu0 %v1001, 96
    %v1050 = vpop.permute.xlu0 %1049
    %1051 = vrot.lane.b32.xlu0 %v1002, 96
    %v1052 = vpop.permute.xlu0 %1051
    %1053 = vrot.lane.b32.xlu0 %v1003, 96
    %v1054 = vpop.permute.xlu0 %1053
    %1055 = vrot.lane.b32.xlu0 %v1004, 96
    %v1056 = vpop.permute.xlu0 %1055
    %1057 = vrot.lane.b32.xlu0 %v1005, 96
    %v1058 = vpop.permute.xlu0 %1057
    %1059 = vrot.lane.b32.xlu0 %v1006, 96
    %v1060 = vpop.permute.xlu0 %1059
    %1061 = vrot.lane.b32.xlu0 %v1007, 96
    %v1062 = vpop.permute.xlu0 %1061
    %1063 = vrot.lane.b32.xlu0 %v1008, 96
    %v1064 = vpop.permute.xlu0 %1063
    %1065 = vrot.lane.b32.xlu0 %v1009, 96
    %v1066 = vpop.permute.xlu0 %1065
    %1067 = vrot.lane.b32.xlu0 %v1010, 96
    %v1068 = vpop.permute.xlu0 %1067
    %1069 = vrot.lane.b32.xlu0 %v1011, 96
    %v1070 = vpop.permute.xlu0 %1069
    %1071 = vrot.lane.b32.xlu0 %v1012, 96
    %v1072 = vpop.permute.xlu0 %1071
    %1073 = vrot.lane.b32.xlu0 %v1013, 96
    %v1074 = vpop.permute.xlu0 %1073
    %1075 = vrot.lane.b32.xlu0 %v1014, 96
    %v1076 = vpop.permute.xlu0 %1075
    %1077 = vrot.lane.b32.xlu0 %v1015, 96
    %v1078 = vpop.permute.xlu0 %1077
    %1079 = vrot.lane.b32.xlu0 %v1016, 96
    %v1080 = vpop.permute.xlu0 %1079
    %v1097 = vpack.c.bf16 %v1050, %v1080
    %v1098 = vpack.c.bf16 %v1054, %v1052
    %v1099 = vpack.c.bf16 %v1058, %v1056
    %v1100 = vpack.c.bf16 %v1062, %v1060
    %v1101 = vpack.c.bf16 %v1066, %v1064
    %v1102 = vpack.c.bf16 %v1070, %v1068
    %v1103 = vpack.c.bf16 %v1074, %v1072
    %v1104 = vpack.c.bf16 %v1078, %v1076
    %v1105 = vpack.c.bf16 %v1002, %v1001
    %v1106 = vpack.c.bf16 %v1004, %v1003
    %v1107 = vpack.c.bf16 %v1006, %v1005
    %v1108 = vpack.c.bf16 %v1008, %v1007
    %v1109 = vpack.c.bf16 %v1010, %v1009
    %v1110 = vpack.c.bf16 %v1012, %v1011
    %v1111 = vpack.c.bf16 %v1014, %v1013
    %v1112 = vpack.c.bf16 %v1016, %v1015
    %1121 = vrot.lane.b32.xlu0 %v1098, 64
    %v1122 = vpop.permute.xlu0 %1121
    %1123 = vrot.lane.b32.xlu0 %v1099, 64
    %v1124 = vpop.permute.xlu0 %1123
    %1125 = vrot.lane.b32.xlu0 %v1100, 64
    %v1126 = vpop.permute.xlu0 %1125
    %1127 = vrot.lane.b32.xlu0 %v1101, 64
    %v1128 = vpop.permute.xlu0 %1127
    %1129 = vrot.lane.b32.xlu0 %v1102, 64
    %v1130 = vpop.permute.xlu0 %1129
    %1131 = vrot.lane.b32.xlu0 %v1103, 64
    %v1132 = vpop.permute.xlu0 %1131
    %1133 = vrot.lane.b32.xlu0 %v1104, 64
    %v1134 = vpop.permute.xlu0 %1133
    %1135 = vrot.lane.b32.xlu0 %v1097, 64
    %v1136 = vpop.permute.xlu0 %1135
    %v1139 = vsel %vm177, %v1097, %v1105
    %v1142 = vsel %vm177, %v1098, %v1106
    %v1145 = vsel %vm177, %v1099, %v1107
    %v1148 = vsel %vm177, %v1100, %v1108
    %v1151 = vsel %vm177, %v1101, %v1109
    %v1154 = vsel %vm177, %v1102, %v1110
    %v1157 = vsel %vm177, %v1103, %v1111
    %v1160 = vsel %vm177, %v1104, %v1112
    %v1162 = vsel %vm202, %v1139, %v1122
    %v1164 = vsel %vm202, %v1142, %v1124
    %v1166 = vsel %vm202, %v1145, %v1126
    %v1168 = vsel %vm202, %v1148, %v1128
    %v1170 = vsel %vm202, %v1151, %v1130
    %v1172 = vsel %vm202, %v1154, %v1132
    %v1174 = vsel %vm202, %v1157, %v1134
    %v1176 = vsel %vm202, %v1160, %v1136
    %v1189 = vunpack.c.l.b16 %v1019
    %v1190 = vunpack.c.l.b16 %v1020
    %v1191 = vunpack.c.l.b16 %v1021
    %v1192 = vunpack.c.l.b16 %v1022
    %v1193 = vunpack.c.l.b16 %v1023
    %v1194 = vunpack.c.l.b16 %v1024
    %v1195 = vunpack.c.l.b16 %v1025
    %v1196 = vunpack.c.l.b16 %v1026
    %v1197 = vunpack.c.l.b16 %v1027
    %v1198 = vunpack.c.l.b16 %v1028
    %v1199 = vunpack.c.l.b16 %v1029
    %v1200 = vunpack.c.l.b16 %v1030
    %v1201 = vpack.c.b16 %v1190, %v1189
    %v1202 = vpack.c.b16 %v1192, %v1191
    %v1203 = vpack.c.b16 %v1194, %v1193
    %v1204 = vpack.c.b16 %v1196, %v1195
    %v1205 = vpack.c.b16 %v1198, %v1197
    %v1206 = vpack.c.b16 %v1200, %v1199
    %v1213 = vsel %vm255, %v1162, 0
    %v1215 = vsel %vm255, %v1164, 0
    %v1217 = vsel %vm255, %v1166, 0
    %v1219 = vsel %vm255, %v1168, 0
    %v1221 = vsel %vm255, %v1170, 0
    %v1223 = vsel %vm255, %v1172, 0
    %v1225 = vsel %vm255, %v1174, 0
    %v1227 = vsel %vm255, %v1176, 0
    %1229 = vmatprep.subr.bf16.mxu0 0
    %1230 = vmatpush1.bf16.msra.mxu0 0
    %1231 = vmatprep.subr.bf16.mxu0 0
    %1232 = vmatpush1.bf16.msra.mxu0 0
    %1233 = vmatprep.subr.bf16.mxu0 0
    %1234 = vmatpush1.bf16.msra.mxu0 %v1206
    %1235 = vmatprep.subr.bf16.mxu0 0
    %1236 = vmatpush1.bf16.msra.mxu0 %v1205
    %1237 = vmatprep.subr.bf16.mxu0 0
    %1238 = vmatpush1.bf16.msra.mxu0 %v1204
    %1239 = vmatprep.subr.bf16.mxu0 0
    %1240 = vmatpush1.bf16.msra.mxu0 %v1203
    %1241 = vmatprep.subr.bf16.mxu0 0
    %1242 = vmatpush1.bf16.msra.mxu0 %v1202
    %1243 = vmatprep.subr.bf16.mxu0 0
    %1244 = vmatpush1.bf16.msra.mxu0 %v1201
    %1245 = vmatprep.subr.bf16.mxu0 0
    %1246 = vmatpush2.bf16.msra.mxu0 0
    %1247 = vmatprep.subr.bf16.mxu0 0
    %1248 = vmatpush2.bf16.msra.mxu0 0
    %1249 = vmatprep.subr.bf16.mxu0 0
    %1250 = vmatpush2.bf16.msra.mxu0 0
    %1251 = vmatprep.subr.bf16.mxu0 0
    %1252 = vmatpush2.bf16.msra.mxu0 0
    %1253 = vmatprep.subr.bf16.mxu0 0
    %1254 = vmatpush2.bf16.msra.mxu0 0
    %1255 = vmatprep.subr.bf16.mxu0 0
    %1256 = vmatpush2.bf16.msra.mxu0 0
    %1257 = vmatprep.subr.bf16.mxu0 0
    %1258 = vmatpush2.bf16.msra.mxu0 0
    %1259 = vmatprep.subr.bf16.mxu0 0
    %1260 = vmatpush2.bf16.msra.mxu0 0
    %1261 = vmatprep.mubr.bf16.mxu0 0
    %1262 = vmatmul.mubr.bf16.gmra.mxu0 %v1213
    %v1263 = vpop.f32.mrf.mxu0
    %v1264 = vadd.f32 0.0, %v1263
    %v1265 = vpop.f32.mrf.mxu0
    %v1266 = vpop.f32.mrf.mxu0
    %v1267 = vadd.f32 0.0, %v1266
    %v1268 = vpop.f32.mrf.mxu0
    %1269 = vmatprep.mubr.bf16.mxu0 0
    %1270 = vmatmul.mubr.bf16.gmra.mxu0 %v1215
    %v1271 = vpop.f32.mrf.mxu0
    %v1272 = vadd.f32 0.0, %v1271
    %v1273 = vpop.f32.mrf.mxu0
    %v1274 = vpop.f32.mrf.mxu0
    %v1275 = vadd.f32 0.0, %v1274
    %v1276 = vpop.f32.mrf.mxu0
    %1277 = vmatprep.mubr.bf16.mxu0 0
    %1278 = vmatmul.mubr.bf16.gmra.mxu0 %v1217
    %v1279 = vpop.f32.mrf.mxu0
    %v1280 = vadd.f32 0.0, %v1279
    %v1281 = vpop.f32.mrf.mxu0
    %v1282 = vpop.f32.mrf.mxu0
    %v1283 = vadd.f32 0.0, %v1282
    %v1284 = vpop.f32.mrf.mxu0
    %1285 = vmatprep.mubr.bf16.mxu0 0
    %1286 = vmatmul.mubr.bf16.gmra.mxu0 %v1219
    %v1287 = vpop.f32.mrf.mxu0
    %v1288 = vadd.f32 0.0, %v1287
    %v1289 = vpop.f32.mrf.mxu0
    %v1290 = vpop.f32.mrf.mxu0
    %v1291 = vadd.f32 0.0, %v1290
    %v1292 = vpop.f32.mrf.mxu0
    %1293 = vmatprep.mubr.bf16.mxu0 0
    %1294 = vmatmul.mubr.bf16.gmra.mxu0 %v1221
    %v1295 = vpop.f32.mrf.mxu0
    %v1296 = vadd.f32 0.0, %v1295
    %v1297 = vpop.f32.mrf.mxu0
    %v1298 = vpop.f32.mrf.mxu0
    %v1299 = vadd.f32 0.0, %v1298
    %v1300 = vpop.f32.mrf.mxu0
    %1301 = vmatprep.mubr.bf16.mxu0 0
    %1302 = vmatmul.mubr.bf16.gmra.mxu0 %v1223
    %v1303 = vpop.f32.mrf.mxu0
    %v1304 = vadd.f32 0.0, %v1303
    %v1305 = vpop.f32.mrf.mxu0
    %v1306 = vpop.f32.mrf.mxu0
    %v1307 = vadd.f32 0.0, %v1306
    %v1308 = vpop.f32.mrf.mxu0
    %1309 = vmatprep.mubr.bf16.mxu0 0
    %1310 = vmatmul.mubr.bf16.gmra.mxu0 %v1225
    %v1311 = vpop.f32.mrf.mxu0
    %v1312 = vadd.f32 0.0, %v1311
    %v1313 = vpop.f32.mrf.mxu0
    %v1314 = vpop.f32.mrf.mxu0
    %v1315 = vadd.f32 0.0, %v1314
    %v1316 = vpop.f32.mrf.mxu0
    %1317 = vmatprep.mubr.bf16.mxu0 0
    %1318 = vmatmul.mubr.bf16.gmra.mxu0 %v1227
    %v1319 = vpop.f32.mrf.mxu0
    %v1320 = vadd.f32 0.0, %v1319
    %v1321 = vpop.f32.mrf.mxu0
    %v1322 = vpop.f32.mrf.mxu0
    %v1323 = vadd.f32 0.0, %v1322
    %v1324 = vpop.f32.mrf.mxu0
    %1325 = vdwg.mxu0
    %v1326 = vrot.slane %v1264, 7
    %v1327 = vrot.slane %v1267, 7
    %v1328 = vrot.slane %v1272, 7
    %v1329 = vrot.slane %v1275, 7
    %v1330 = vrot.slane %v1280, 7
    %v1331 = vrot.slane %v1283, 7
    %v1332 = vrot.slane %v1288, 7
    %v1333 = vrot.slane %v1291, 7
    %v1334 = vrot.slane %v1296, 7
    %v1335 = vrot.slane %v1299, 7
    %v1336 = vrot.slane %v1304, 7
    %v1337 = vrot.slane %v1307, 7
    %v1338 = vrot.slane %v1312, 7
    %v1339 = vrot.slane %v1315, 7
    %v1340 = vrot.slane %v1320, 7
    %v1341 = vrot.slane %v1323, 7
    %v1342 = vsel %vm387, %v1340, %v1341
    %v1343 = vsel %vm387, %v1339, %v1340
    %v1344 = vsel %vm387, %v1338, %v1339
    %v1345 = vsel %vm387, %v1337, %v1338
    %v1346 = vsel %vm387, %v1336, %v1337
    %v1347 = vsel %vm387, %v1335, %v1336
    %v1348 = vsel %vm387, %v1334, %v1335
    %v1349 = vsel %vm387, %v1333, %v1334
    %v1350 = vsel %vm387, %v1332, %v1333
    %v1351 = vsel %vm387, %v1331, %v1332
    %v1352 = vsel %vm387, %v1330, %v1331
    %v1353 = vsel %vm387, %v1329, %v1330
    %v1354 = vsel %vm387, %v1328, %v1329
    %v1355 = vsel %vm387, %v1327, %v1328
    %v1356 = vsel %vm387, %v1326, %v1327
    %v1357 = vsel %vm387, %v1341, %v1326
    %1374 = vrot.lane.b32.xlu0 %v1357, 32
    %v1375 = vpop.permute.xlu0 %1374
    %1376 = vrot.lane.b32.xlu0 %v1356, 32
    %v1377 = vpop.permute.xlu0 %1376
    %1378 = vrot.lane.b32.xlu0 %v1355, 32
    %v1379 = vpop.permute.xlu0 %1378
    %1380 = vrot.lane.b32.xlu0 %v1354, 32
    %v1381 = vpop.permute.xlu0 %1380
    %1382 = vrot.lane.b32.xlu0 %v1353, 32
    %v1383 = vpop.permute.xlu0 %1382
    %1384 = vrot.lane.b32.xlu0 %v1352, 32
    %v1385 = vpop.permute.xlu0 %1384
    %1386 = vrot.lane.b32.xlu0 %v1351, 32
    %v1387 = vpop.permute.xlu0 %1386
    %1388 = vrot.lane.b32.xlu0 %v1350, 32
    %v1389 = vpop.permute.xlu0 %1388
    %1390 = vrot.lane.b32.xlu0 %v1349, 32
    %v1391 = vpop.permute.xlu0 %1390
    %1392 = vrot.lane.b32.xlu0 %v1348, 32
    %v1393 = vpop.permute.xlu0 %1392
    %1394 = vrot.lane.b32.xlu0 %v1347, 32
    %v1395 = vpop.permute.xlu0 %1394
    %1396 = vrot.lane.b32.xlu0 %v1346, 32
    %v1397 = vpop.permute.xlu0 %1396
    %1398 = vrot.lane.b32.xlu0 %v1345, 32
    %v1399 = vpop.permute.xlu0 %1398
    %1400 = vrot.lane.b32.xlu0 %v1344, 32
    %v1401 = vpop.permute.xlu0 %1400
    %1402 = vrot.lane.b32.xlu0 %v1343, 32
    %v1403 = vpop.permute.xlu0 %1402
    %1404 = vrot.lane.b32.xlu0 %v1342, 32
    %v1405 = vpop.permute.xlu0 %1404
    %v1422 = vadd.f32 %v1264, %v1375
    %v1423 = vadd.f32 %v1267, %v1377
    %v1424 = vadd.f32 %v1272, %v1379
    %v1425 = vadd.f32 %v1275, %v1381
    %v1426 = vadd.f32 %v1280, %v1383
    %v1427 = vadd.f32 %v1283, %v1385
    %v1428 = vadd.f32 %v1288, %v1387
    %v1429 = vadd.f32 %v1291, %v1389
    %v1430 = vadd.f32 %v1296, %v1391
    %v1431 = vadd.f32 %v1299, %v1393
    %v1432 = vadd.f32 %v1304, %v1395
    %v1433 = vadd.f32 %v1307, %v1397
    %v1434 = vadd.f32 %v1312, %v1399
    %v1435 = vadd.f32 %v1315, %v1401
    %v1436 = vadd.f32 %v1320, %v1403
    %v1437 = vadd.f32 %v1323, %v1405
    %1454 = vrot.lane.b32.xlu0 %v1264, 64
    %v1455 = vpop.permute.xlu0 %1454
    %1456 = vrot.lane.b32.xlu0 %v1267, 64
    %v1457 = vpop.permute.xlu0 %1456
    %1458 = vrot.lane.b32.xlu0 %v1272, 64
    %v1459 = vpop.permute.xlu0 %1458
    %1460 = vrot.lane.b32.xlu0 %v1275, 64
    %v1461 = vpop.permute.xlu0 %1460
    %1462 = vrot.lane.b32.xlu0 %v1280, 64
    %v1463 = vpop.permute.xlu0 %1462
    %1464 = vrot.lane.b32.xlu0 %v1283, 64
    %v1465 = vpop.permute.xlu0 %1464
    %1466 = vrot.lane.b32.xlu0 %v1288, 64
    %v1467 = vpop.permute.xlu0 %1466
    %1468 = vrot.lane.b32.xlu0 %v1291, 64
    %v1469 = vpop.permute.xlu0 %1468
    %1470 = vrot.lane.b32.xlu0 %v1296, 64
    %v1471 = vpop.permute.xlu0 %1470
    %1472 = vrot.lane.b32.xlu0 %v1299, 64
    %v1473 = vpop.permute.xlu0 %1472
    %1474 = vrot.lane.b32.xlu0 %v1304, 64
    %v1475 = vpop.permute.xlu0 %1474
    %1476 = vrot.lane.b32.xlu0 %v1307, 64
    %v1477 = vpop.permute.xlu0 %1476
    %1478 = vrot.lane.b32.xlu0 %v1312, 64
    %v1479 = vpop.permute.xlu0 %1478
    %1480 = vrot.lane.b32.xlu0 %v1315, 64
    %v1481 = vpop.permute.xlu0 %1480
    %1482 = vrot.lane.b32.xlu0 %v1320, 64
    %v1483 = vpop.permute.xlu0 %1482
    %1484 = vrot.lane.b32.xlu0 %v1323, 64
    %v1485 = vpop.permute.xlu0 %1484
    %v1502 = vrot.slane %v1455, 1
    %v1503 = vrot.slane %v1457, 1
    %v1504 = vrot.slane %v1459, 1
    %v1505 = vrot.slane %v1461, 1
    %v1506 = vrot.slane %v1463, 1
    %v1507 = vrot.slane %v1465, 1
    %v1508 = vrot.slane %v1467, 1
    %v1509 = vrot.slane %v1469, 1
    %v1510 = vrot.slane %v1471, 1
    %v1511 = vrot.slane %v1473, 1
    %v1512 = vrot.slane %v1475, 1
    %v1513 = vrot.slane %v1477, 1
    %v1514 = vrot.slane %v1479, 1
    %v1515 = vrot.slane %v1481, 1
    %v1516 = vrot.slane %v1483, 1
    %v1517 = vrot.slane %v1485, 1
    %v1518 = vsel %vm564, %v1516, %v1517
    %v1519 = vsel %vm564, %v1515, %v1516
    %v1520 = vsel %vm564, %v1514, %v1515
    %v1521 = vsel %vm564, %v1513, %v1514
    %v1522 = vsel %vm564, %v1512, %v1513
    %v1523 = vsel %vm564, %v1511, %v1512
    %v1524 = vsel %vm564, %v1510, %v1511
    %v1525 = vsel %vm564, %v1509, %v1510
    %v1526 = vsel %vm564, %v1508, %v1509
    %v1527 = vsel %vm564, %v1507, %v1508
    %v1528 = vsel %vm564, %v1506, %v1507
    %v1529 = vsel %vm564, %v1505, %v1506
    %v1530 = vsel %vm564, %v1504, %v1505
    %v1531 = vsel %vm564, %v1503, %v1504
    %v1532 = vsel %vm564, %v1502, %v1503
    %v1533 = vsel %vm564, %v1517, %v1502
    %1550 = vrot.lane.b32.xlu0 %v1532, 32
    %v1551 = vpop.permute.xlu0 %1550
    %1552 = vrot.lane.b32.xlu0 %v1531, 32
    %v1553 = vpop.permute.xlu0 %1552
    %1554 = vrot.lane.b32.xlu0 %v1530, 32
    %v1555 = vpop.permute.xlu0 %1554
    %1556 = vrot.lane.b32.xlu0 %v1529, 32
    %v1557 = vpop.permute.xlu0 %1556
    %1558 = vrot.lane.b32.xlu0 %v1528, 32
    %v1559 = vpop.permute.xlu0 %1558
    %1560 = vrot.lane.b32.xlu0 %v1527, 32
    %v1561 = vpop.permute.xlu0 %1560
    %1562 = vrot.lane.b32.xlu0 %v1526, 32
    %v1563 = vpop.permute.xlu0 %1562
    %1564 = vrot.lane.b32.xlu0 %v1525, 32
    %v1565 = vpop.permute.xlu0 %1564
    %1566 = vrot.lane.b32.xlu0 %v1524, 32
    %v1567 = vpop.permute.xlu0 %1566
    %1568 = vrot.lane.b32.xlu0 %v1523, 32
    %v1569 = vpop.permute.xlu0 %1568
    %1570 = vrot.lane.b32.xlu0 %v1522, 32
    %v1571 = vpop.permute.xlu0 %1570
    %1572 = vrot.lane.b32.xlu0 %v1521, 32
    %v1573 = vpop.permute.xlu0 %1572
    %1574 = vrot.lane.b32.xlu0 %v1520, 32
    %v1575 = vpop.permute.xlu0 %1574
    %1576 = vrot.lane.b32.xlu0 %v1519, 32
    %v1577 = vpop.permute.xlu0 %1576
    %1578 = vrot.lane.b32.xlu0 %v1518, 32
    %v1579 = vpop.permute.xlu0 %1578
    %1580 = vrot.lane.b32.xlu0 %v1533, 32
    %v1581 = vpop.permute.xlu0 %1580
    %v1598 = vadd.f32 %v1422, %v1551
    %v1599 = vadd.f32 %v1423, %v1553
    %v1600 = vadd.f32 %v1424, %v1555
    %v1601 = vadd.f32 %v1425, %v1557
    %v1602 = vadd.f32 %v1426, %v1559
    %v1603 = vadd.f32 %v1427, %v1561
    %v1604 = vadd.f32 %v1428, %v1563
    %v1605 = vadd.f32 %v1429, %v1565
    %v1606 = vadd.f32 %v1430, %v1567
    %v1607 = vadd.f32 %v1431, %v1569
    %v1608 = vadd.f32 %v1432, %v1571
    %v1609 = vadd.f32 %v1433, %v1573
    %v1610 = vadd.f32 %v1434, %v1575
    %v1611 = vadd.f32 %v1435, %v1577
    %v1612 = vadd.f32 %v1436, %v1579
    %v1613 = vadd.f32 %v1437, %v1581
    %v1615 = vlaneseq
    %v1616 = vshrl.u32 %v1615, 7
    %v1617 = vsub.s32 0, %v1616
    %v1618 = vrot.slane %v1032, %v1617
    %1619 = vrot.lane.b32.xlu0 %v1618, 32
    %v1620 = vpop.permute.xlu0 %1619
    %v1622 = vadd.f32 %v1598, %v1620
    %v1623 = vadd.f32 %v1599, %v1620
    %v1624 = vadd.f32 %v1600, %v1620
    %v1625 = vadd.f32 %v1601, %v1620
    %v1626 = vadd.f32 %v1602, %v1620
    %v1627 = vadd.f32 %v1603, %v1620
    %v1628 = vadd.f32 %v1604, %v1620
    %v1629 = vadd.f32 %v1605, %v1620
    %v1630 = vadd.f32 %v1606, %v1620
    %v1631 = vadd.f32 %v1607, %v1620
    %v1632 = vadd.f32 %v1608, %v1620
    %v1633 = vadd.f32 %v1609, %v1620
    %v1634 = vadd.f32 %v1610, %v1620
    %v1635 = vadd.f32 %v1611, %v1620
    %v1636 = vadd.f32 %v1612, %v1620
    %v1637 = vadd.f32 %v1613, %v1620
    %s1638 = scalar_lea.vmem %s8, %s75
    %v1639 = vld [vmem:[%s1638] sm:$0x1]
    %s1640 = scalar_lea.vmem %s9, %s75
    %v1641 = vld [vmem:[%s1640] sm:$0x1]
    %v1642 = vmul.f32 %v1622, %v706
    %v1643 = vmul.f32 %v1623, %v708
    %v1644 = vmul.f32 %v1624, %v710
    %v1645 = vmul.f32 %v1625, %v712
    %v1646 = vmul.f32 %v1626, %v714
    %v1647 = vmul.f32 %v1627, %v716
    %v1648 = vmul.f32 %v1628, %v718
    %v1649 = vmul.f32 %v1629, %v720
    %v1650 = vmul.f32 %v1630, %v722
    %v1651 = vmul.f32 %v1631, %v724
    %v1652 = vmul.f32 %v1632, %v726
    %v1653 = vmul.f32 %v1633, %v728
    %v1654 = vmul.f32 %v1634, %v730
    %v1655 = vmul.f32 %v1635, %v732
    %v1656 = vmul.f32 %v1636, %v734
    %v1657 = vmul.f32 %v1637, %v736
    %v1658 = vmul.f32 %v1642, %v1642
    %v1659 = vmul.f32 %v1643, %v1643
    %v1660 = vmul.f32 %v1644, %v1644
    %v1661 = vmul.f32 %v1645, %v1645
    %v1662 = vmul.f32 %v1646, %v1646
    %v1663 = vmul.f32 %v1647, %v1647
    %v1664 = vmul.f32 %v1648, %v1648
    %v1665 = vmul.f32 %v1649, %v1649
    %v1666 = vmul.f32 %v1650, %v1650
    %v1667 = vmul.f32 %v1651, %v1651
    %v1668 = vmul.f32 %v1652, %v1652
    %v1669 = vmul.f32 %v1653, %v1653
    %v1670 = vmul.f32 %v1654, %v1654
    %v1671 = vmul.f32 %v1655, %v1655
    %v1672 = vmul.f32 %v1656, %v1656
    %v1673 = vmul.f32 %v1657, %v1657
    %1690 = vrot.lane.b32.xlu0 %v1642, 96
    %v1691 = vpop.permute.xlu0 %1690
    %1692 = vrot.lane.b32.xlu0 %v1643, 96
    %v1693 = vpop.permute.xlu0 %1692
    %1694 = vrot.lane.b32.xlu0 %v1644, 96
    %v1695 = vpop.permute.xlu0 %1694
    %1696 = vrot.lane.b32.xlu0 %v1645, 96
    %v1697 = vpop.permute.xlu0 %1696
    %1698 = vrot.lane.b32.xlu0 %v1646, 96
    %v1699 = vpop.permute.xlu0 %1698
    %1700 = vrot.lane.b32.xlu0 %v1647, 96
    %v1701 = vpop.permute.xlu0 %1700
    %1702 = vrot.lane.b32.xlu0 %v1648, 96
    %v1703 = vpop.permute.xlu0 %1702
    %1704 = vrot.lane.b32.xlu0 %v1649, 96
    %v1705 = vpop.permute.xlu0 %1704
    %1706 = vrot.lane.b32.xlu0 %v1650, 96
    %v1707 = vpop.permute.xlu0 %1706
    %1708 = vrot.lane.b32.xlu0 %v1651, 96
    %v1709 = vpop.permute.xlu0 %1708
    %1710 = vrot.lane.b32.xlu0 %v1652, 96
    %v1711 = vpop.permute.xlu0 %1710
    %1712 = vrot.lane.b32.xlu0 %v1653, 96
    %v1713 = vpop.permute.xlu0 %1712
    %1714 = vrot.lane.b32.xlu0 %v1654, 96
    %v1715 = vpop.permute.xlu0 %1714
    %1716 = vrot.lane.b32.xlu0 %v1655, 96
    %v1717 = vpop.permute.xlu0 %1716
    %1718 = vrot.lane.b32.xlu0 %v1656, 96
    %v1719 = vpop.permute.xlu0 %1718
    %1720 = vrot.lane.b32.xlu0 %v1657, 96
    %v1721 = vpop.permute.xlu0 %1720
    %v1738 = vsel %vm177, %v1691, %v1658
    %v1739 = vsel %vm177, %v1693, %v1659
    %v1740 = vsel %vm177, %v1695, %v1660
    %v1741 = vsel %vm177, %v1697, %v1661
    %v1742 = vsel %vm177, %v1699, %v1662
    %v1743 = vsel %vm177, %v1701, %v1663
    %v1744 = vsel %vm177, %v1703, %v1664
    %v1745 = vsel %vm177, %v1705, %v1665
    %v1746 = vsel %vm177, %v1707, %v1666
    %v1747 = vsel %vm177, %v1709, %v1667
    %v1748 = vsel %vm177, %v1711, %v1668
    %v1749 = vsel %vm177, %v1713, %v1669
    %v1750 = vsel %vm177, %v1715, %v1670
    %v1751 = vsel %vm177, %v1717, %v1671
    %v1752 = vsel %vm177, %v1719, %v1672
    %v1753 = vsel %vm177, %v1721, %v1673
    %v1754 = vsel %vm202, %v1738, 0.0
    %v1755 = vsel %vm202, %v1739, 0.0
    %v1756 = vadd.f32 %v1754, %v1755
    %v1757 = vsel %vm202, %v1740, 0.0
    %v1758 = vadd.f32 %v1756, %v1757
    %v1759 = vsel %vm202, %v1741, 0.0
    %v1760 = vadd.f32 %v1758, %v1759
    %v1761 = vsel %vm202, %v1742, 0.0
    %v1762 = vadd.f32 %v1760, %v1761
    %v1763 = vsel %vm202, %v1743, 0.0
    %v1764 = vadd.f32 %v1762, %v1763
    %v1765 = vsel %vm202, %v1744, 0.0
    %v1766 = vadd.f32 %v1764, %v1765
    %v1767 = vsel %vm202, %v1745, 0.0
    %v1768 = vadd.f32 %v1766, %v1767
    %v1769 = vsel %vm202, %v1746, 0.0
    %v1770 = vadd.f32 %v1768, %v1769
    %v1771 = vsel %vm202, %v1747, 0.0
    %v1772 = vadd.f32 %v1770, %v1771
    %v1773 = vsel %vm202, %v1748, 0.0
    %v1774 = vadd.f32 %v1772, %v1773
    %v1775 = vsel %vm202, %v1749, 0.0
    %v1776 = vadd.f32 %v1774, %v1775
    %v1777 = vsel %vm202, %v1750, 0.0
    %v1778 = vadd.f32 %v1776, %v1777
    %v1779 = vsel %vm202, %v1751, 0.0
    %v1780 = vadd.f32 %v1778, %v1779
    %v1781 = vsel %vm202, %v1752, 0.0
    %v1782 = vadd.f32 %v1780, %v1781
    %v1783 = vsel %vm202, %v1753, 0.0
    %v1784 = vadd.f32 %v1782, %v1783
    %v1785 = vrot.slane %v1784, 4
    %v1786 = vadd.f32 %v1784, %v1785
    %v1787 = vrot.slane %v1786, 2
    %v1788 = vadd.f32 %v1786, %v1787
    %v1789 = vrot.slane %v1788, 1
    %v1790 = vadd.f32 %v1788, %v1789
    %v1791 = vmul.f32 %v1790, 0.010204081
    %v1792 = vmul.f32 %v1791, %v1791
    %1794 = vrot.lane.b32.xlu0 %v1792, 32
    %v1795 = vpop.permute.xlu0 %1794
    %v1797 = vsub.f32 %v1791, %v1795
    %v1798 = vmax.f32 %v1797, 0.0
    %1800 = vrot.lane.b32.xlu0 %v1791, 32
    %v1801 = vpop.permute.xlu0 %1800
    %v1803 = vsub.f32 %v1622, %v1801
    %v1804 = vsub.f32 %v1623, %v1801
    %v1805 = vsub.f32 %v1624, %v1801
    %v1806 = vsub.f32 %v1625, %v1801
    %v1807 = vsub.f32 %v1626, %v1801
    %v1808 = vsub.f32 %v1627, %v1801
    %v1809 = vsub.f32 %v1628, %v1801
    %v1810 = vsub.f32 %v1629, %v1801
    %v1811 = vsub.f32 %v1630, %v1801
    %v1812 = vsub.f32 %v1631, %v1801
    %v1813 = vsub.f32 %v1632, %v1801
    %v1814 = vsub.f32 %v1633, %v1801
    %v1815 = vsub.f32 %v1634, %v1801
    %v1816 = vsub.f32 %v1635, %v1801
    %v1817 = vsub.f32 %v1636, %v1801
    %v1818 = vsub.f32 %v1637, %v1801
    %v1819 = vadd.f32 %v1798, 1e-05
    %v1820 = vrsqrt.pop %v1819
    %v1822 = vlaneseq
    %v1823 = vshrl.u32 %v1822, 7
    %v1824 = vsub.s32 0, %v1823
    %v1825 = vrot.slane %v1639, %v1824
    %1826 = vrot.lane.b32.xlu0 %v1825, 32
    %v1827 = vpop.permute.xlu0 %1826
    %v1829 = vmul.f32 %v1820, %v1827
    %v1830 = vlaneseq
    %v1831 = vshrl.u32 %v1830, 7
    %v1832 = vsub.s32 0, %v1831
    %v1833 = vrot.slane %v1829, %v1832
    %v1834 = vmul.f32 %v1803, %v1833
    %v1835 = vmul.f32 %v1804, %v1833
    %v1836 = vmul.f32 %v1805, %v1833
    %v1837 = vmul.f32 %v1806, %v1833
    %v1838 = vmul.f32 %v1807, %v1833
    %v1839 = vmul.f32 %v1808, %v1833
    %v1840 = vmul.f32 %v1809, %v1833
    %v1841 = vmul.f32 %v1810, %v1833
    %v1842 = vmul.f32 %v1811, %v1833
    %v1843 = vmul.f32 %v1812, %v1833
    %v1844 = vmul.f32 %v1813, %v1833
    %v1845 = vmul.f32 %v1814, %v1833
    %v1846 = vmul.f32 %v1815, %v1833
    %v1847 = vmul.f32 %v1816, %v1833
    %v1848 = vmul.f32 %v1817, %v1833
    %v1849 = vmul.f32 %v1818, %v1833
    %v1851 = vlaneseq
    %v1852 = vshrl.u32 %v1851, 7
    %v1853 = vsub.s32 0, %v1852
    %v1854 = vrot.slane %v1641, %v1853
    %1855 = vrot.lane.b32.xlu0 %v1854, 32
    %v1856 = vpop.permute.xlu0 %1855
    %v1858 = vadd.f32 %v1834, %v1856
    %v1859 = vadd.f32 %v1835, %v1856
    %v1860 = vadd.f32 %v1836, %v1856
    %v1861 = vadd.f32 %v1837, %v1856
    %v1862 = vadd.f32 %v1838, %v1856
    %v1863 = vadd.f32 %v1839, %v1856
    %v1864 = vadd.f32 %v1840, %v1856
    %v1865 = vadd.f32 %v1841, %v1856
    %v1866 = vadd.f32 %v1842, %v1856
    %v1867 = vadd.f32 %v1843, %v1856
    %v1868 = vadd.f32 %v1844, %v1856
    %v1869 = vadd.f32 %v1845, %v1856
    %v1870 = vadd.f32 %v1846, %v1856
    %v1871 = vadd.f32 %v1847, %v1856
    %v1872 = vadd.f32 %v1848, %v1856
    %v1873 = vadd.f32 %v1849, %v1856
    %1890 = vrot.lane.b32.xlu0 %v80, 32
    %v1891 = vpop.permute.xlu0 %1890
    %1892 = vrot.lane.b32.xlu0 %v81, 32
    %v1893 = vpop.permute.xlu0 %1892
    %1894 = vrot.lane.b32.xlu0 %v82, 32
    %v1895 = vpop.permute.xlu0 %1894
    %1896 = vrot.lane.b32.xlu0 %v83, 32
    %v1897 = vpop.permute.xlu0 %1896
    %1898 = vrot.lane.b32.xlu0 %v84, 32
    %v1899 = vpop.permute.xlu0 %1898
    %1900 = vrot.lane.b32.xlu0 %v85, 32
    %v1901 = vpop.permute.xlu0 %1900
    %1902 = vrot.lane.b32.xlu0 %v86, 32
    %v1903 = vpop.permute.xlu0 %1902
    %1904 = vrot.lane.b32.xlu0 %v87, 32
    %v1905 = vpop.permute.xlu0 %1904
    %1906 = vrot.lane.b32.xlu0 %v88, 32
    %v1907 = vpop.permute.xlu0 %1906
    %1908 = vrot.lane.b32.xlu0 %v89, 32
    %v1909 = vpop.permute.xlu0 %1908
    %1910 = vrot.lane.b32.xlu0 %v90, 32
    %v1911 = vpop.permute.xlu0 %1910
    %1912 = vrot.lane.b32.xlu0 %v91, 32
    %v1913 = vpop.permute.xlu0 %1912
    %1914 = vrot.lane.b32.xlu0 %v92, 32
    %v1915 = vpop.permute.xlu0 %1914
    %1916 = vrot.lane.b32.xlu0 %v93, 32
    %v1917 = vpop.permute.xlu0 %1916
    %1918 = vrot.lane.b32.xlu0 %v94, 32
    %v1919 = vpop.permute.xlu0 %1918
    %1920 = vrot.lane.b32.xlu0 %v95, 32
    %v1921 = vpop.permute.xlu0 %1920
    %v1938 = vadd.f32 %v1858, %v1891
    %v1939 = vadd.f32 %v1859, %v1893
    %v1940 = vadd.f32 %v1860, %v1895
    %v1941 = vadd.f32 %v1861, %v1897
    %v1942 = vadd.f32 %v1862, %v1899
    %v1943 = vadd.f32 %v1863, %v1901
    %v1944 = vadd.f32 %v1864, %v1903
    %v1945 = vadd.f32 %v1865, %v1905
    %v1946 = vadd.f32 %v1866, %v1907
    %v1947 = vadd.f32 %v1867, %v1909
    %v1948 = vadd.f32 %v1868, %v1911
    %v1949 = vadd.f32 %v1869, %v1913
    %v1950 = vadd.f32 %v1870, %v1915
    %v1951 = vadd.f32 %v1871, %v1917
    %v1952 = vadd.f32 %v1872, %v1919
    %v1953 = vadd.f32 %v1873, %v1921
    %v1954 = vmax.f32 %v1938, 0.0
    %v1955 = vmax.f32 %v1939, 0.0
    %v1956 = vmax.f32 %v1940, 0.0
    %v1957 = vmax.f32 %v1941, 0.0
    %v1958 = vmax.f32 %v1942, 0.0
    %v1959 = vmax.f32 %v1943, 0.0
    %v1960 = vmax.f32 %v1944, 0.0
    %v1961 = vmax.f32 %v1945, 0.0
    %v1962 = vmax.f32 %v1946, 0.0
    %v1963 = vmax.f32 %v1947, 0.0
    %v1964 = vmax.f32 %v1948, 0.0
    %v1965 = vmax.f32 %v1949, 0.0
    %v1966 = vmax.f32 %v1950, 0.0
    %v1967 = vmax.f32 %v1951, 0.0
    %v1968 = vmax.f32 %v1952, 0.0
    %v1969 = vmax.f32 %v1953, 0.0
    %v1970 = vmul.f32 %v1954, %v706
    %v1971 = vmul.f32 %v1955, %v708
    %v1972 = vmul.f32 %v1956, %v710
    %v1973 = vmul.f32 %v1957, %v712
    %v1974 = vmul.f32 %v1958, %v714
    %v1975 = vmul.f32 %v1959, %v716
    %v1976 = vmul.f32 %v1960, %v718
    %v1977 = vmul.f32 %v1961, %v720
    %v1978 = vmul.f32 %v1962, %v722
    %v1979 = vmul.f32 %v1963, %v724
    %v1980 = vmul.f32 %v1964, %v726
    %v1981 = vmul.f32 %v1965, %v728
    %v1982 = vmul.f32 %v1966, %v730
    %v1983 = vmul.f32 %v1967, %v732
    %v1984 = vmul.f32 %v1968, %v734
    %v1985 = vmul.f32 %v1969, %v736
    %2002 = vrot.lane.b32.xlu0 %v1970, 96
    %v2003 = vpop.permute.xlu0 %2002
    %2004 = vrot.lane.b32.xlu0 %v1971, 96
    %v2005 = vpop.permute.xlu0 %2004
    %2006 = vrot.lane.b32.xlu0 %v1972, 96
    %v2007 = vpop.permute.xlu0 %2006
    %2008 = vrot.lane.b32.xlu0 %v1973, 96
    %v2009 = vpop.permute.xlu0 %2008
    %2010 = vrot.lane.b32.xlu0 %v1974, 96
    %v2011 = vpop.permute.xlu0 %2010
    %2012 = vrot.lane.b32.xlu0 %v1975, 96
    %v2013 = vpop.permute.xlu0 %2012
    %2014 = vrot.lane.b32.xlu0 %v1976, 96
    %v2015 = vpop.permute.xlu0 %2014
    %2016 = vrot.lane.b32.xlu0 %v1977, 96
    %v2017 = vpop.permute.xlu0 %2016
    %2018 = vrot.lane.b32.xlu0 %v1978, 96
    %v2019 = vpop.permute.xlu0 %2018
    %2020 = vrot.lane.b32.xlu0 %v1979, 96
    %v2021 = vpop.permute.xlu0 %2020
    %2022 = vrot.lane.b32.xlu0 %v1980, 96
    %v2023 = vpop.permute.xlu0 %2022
    %2024 = vrot.lane.b32.xlu0 %v1981, 96
    %v2025 = vpop.permute.xlu0 %2024
    %2026 = vrot.lane.b32.xlu0 %v1982, 96
    %v2027 = vpop.permute.xlu0 %2026
    %2028 = vrot.lane.b32.xlu0 %v1983, 96
    %v2029 = vpop.permute.xlu0 %2028
    %2030 = vrot.lane.b32.xlu0 %v1984, 96
    %v2031 = vpop.permute.xlu0 %2030
    %2032 = vrot.lane.b32.xlu0 %v1985, 96
    %v2033 = vpop.permute.xlu0 %2032
  $region54: #{tpu_custom_call.1} parent=0 // loop_footer
    %s79 = sadd.s32 1, %s75
  $region55: #{tpu_custom_call.1} parent=0 // loop_footer_branch
    %74 = sbr.rel target = $region51
  $region56: #{tpu_custom_call.1} parent=0 // loop_exit
    _
  %v2050 = vpack.c.bf16 %v81, %v80
  %v2051 = vpack.c.bf16 %v83, %v82
  %v2052 = vpack.c.bf16 %v85, %v84
  %v2053 = vpack.c.bf16 %v87, %v86
  %v2054 = vpack.c.bf16 %v89, %v88
  %v2055 = vpack.c.bf16 %v91, %v90
  %v2056 = vpack.c.bf16 %v93, %v92
  %v2057 = vpack.c.bf16 %v95, %v94
  %v2058 = vld [vmem:[%s10] sm:$0xf]
  %v2059 = vld [vmem:[%s10 + $0x4] sm:$0xf]
  %v2060 = vld [vmem:[%s10 + $0x8] sm:$0xf]
  %v2061 = vld [vmem:[%s10 + $0xc] sm:$0xf]
  %v2062 = vld [vmem:[%s11] sm:$0xff]
  %v2063 = vld [vmem:[%s11 + $0x8] sm:$0xff]
  %v2064 = vld [vmem:[%s11 + $0x10] sm:$0xff]
  %v2065 = vld [vmem:[%s11 + $0x18] sm:$0xff]
  %v2066 = vld [vmem:[%s11 + $0x20] sm:$0xff]
  %v2067 = vld [vmem:[%s11 + $0x28] sm:$0xff]
  %v2068 = vld [vmem:[%s11 + $0x30] sm:$0xff]
  %v2069 = vld [vmem:[%s11 + $0x38] sm:$0xff]
  %v2070 = vld [vmem:[%s11 + $0x40] sm:$0xff]
  %v2071 = vld [vmem:[%s11 + $0x48] sm:$0xff]
  %v2072 = vld [vmem:[%s11 + $0x50] sm:$0xff]
  %v2073 = vld [vmem:[%s11 + $0x58] sm:$0xff]
  %v2074 = vld [vmem:[%s11 + $0x60] sm:$0xff]
  %v2075 = vld [vmem:[%s11 + $0x68] sm:$0xff]
  %v2076 = vld [vmem:[%s11 + $0x70] sm:$0xff]
  %v2077 = vld [vmem:[%s11 + $0x78] sm:$0xff]
  %v2082 = vunpack.c.l.b16 %v2058
  %v2083 = vunpack.c.l.b16 %v2059
  %v2084 = vunpack.c.l.b16 %v2060
  %v2085 = vunpack.c.l.b16 %v2061
  %v2086 = vpack.c.b16 %v2083, %v2082
  %v2087 = vpack.c.b16 %v2085, %v2084
  %vm2090 = vcmask 261120
  %v2092 = vsel %vm2090, %v2050, 0
  %v2095 = vsel %vm2090, %v2051, 0
  %v2098 = vsel %vm2090, %v2052, 0
  %v2101 = vsel %vm2090, %v2053, 0
  %v2104 = vsel %vm2090, %v2054, 0
  %v2107 = vsel %vm2090, %v2055, 0
  %v2110 = vsel %vm2090, %v2056, 0
  %v2113 = vsel %vm2090, %v2057, 0
  %2115 = vmatprep.subr.bf16.mxu0 0
  %2116 = vmatpush1.bf16.msra.mxu0 0
  %2117 = vmatprep.subr.bf16.mxu0 0
  %2118 = vmatpush1.bf16.msra.mxu0 0
  %2119 = vmatprep.subr.bf16.mxu0 0
  %2120 = vmatpush1.bf16.msra.mxu0 0
  %2121 = vmatprep.subr.bf16.mxu0 0
  %2122 = vmatpush1.bf16.msra.mxu0 0
  %2123 = vmatprep.subr.bf16.mxu0 0
  %2124 = vmatpush1.bf16.msra.mxu0 0
  %2125 = vmatprep.subr.bf16.mxu0 0
  %2126 = vmatpush1.bf16.msra.mxu0 0
  %2127 = vmatprep.subr.bf16.mxu0 0
  %2128 = vmatpush1.bf16.msra.mxu0 %v2087
  %2129 = vmatprep.subr.bf16.mxu0 0
  %2130 = vmatpush1.bf16.msra.mxu0 %v2086
  %2131 = vmatprep.subr.bf16.mxu0 0
  %2132 = vmatpush2.bf16.msra.mxu0 0
  %2133 = vmatprep.subr.bf16.mxu0 0
  %2134 = vmatpush2.bf16.msra.mxu0 0
  %2135 = vmatprep.subr.bf16.mxu0 0
  %2136 = vmatpush2.bf16.msra.mxu0 0
  %2137 = vmatprep.subr.bf16.mxu0 0
  %2138 = vmatpush2.bf16.msra.mxu0 0
  %2139 = vmatprep.subr.bf16.mxu0 0
  %2140 = vmatpush2.bf16.msra.mxu0 0
  %2141 = vmatprep.subr.bf16.mxu0 0
  %2142 = vmatpush2.bf16.msra.mxu0 0
  %2143 = vmatprep.subr.bf16.mxu0 0
  %2144 = vmatpush2.bf16.msra.mxu0 0
  %2145 = vmatprep.subr.bf16.mxu0 0
  %2146 = vmatpush2.bf16.msra.mxu0 0
  %2147 = vmatprep.mubr.bf16.mxu0 0
  %2148 = vmatmul.mubr.bf16.gmra.mxu0 %v2092
  %v2149 = vpop.f32.mrf.mxu0
  %v2150 = vadd.f32 %v2062, %v2149
  %v2151 = vpop.f32.mrf.mxu0
  %v2152 = vpop.f32.mrf.mxu0
  %v2153 = vadd.f32 %v2063, %v2152
  %v2154 = vpop.f32.mrf.mxu0
  %2155 = vmatprep.mubr.bf16.mxu0 0
  %2156 = vmatmul.mubr.bf16.gmra.mxu0 %v2095
  %v2157 = vpop.f32.mrf.mxu0
  %v2158 = vadd.f32 %v2064, %v2157
  %v2159 = vpop.f32.mrf.mxu0
  %v2160 = vpop.f32.mrf.mxu0
  %v2161 = vadd.f32 %v2065, %v2160
  %v2162 = vpop.f32.mrf.mxu0
  %2163 = vmatprep.mubr.bf16.mxu0 0
  %2164 = vmatmul.mubr.bf16.gmra.mxu0 %v2098
  %v2165 = vpop.f32.mrf.mxu0
  %v2166 = vadd.f32 %v2066, %v2165
  %v2167 = vpop.f32.mrf.mxu0
  %v2168 = vpop.f32.mrf.mxu0
  %v2169 = vadd.f32 %v2067, %v2168
  %v2170 = vpop.f32.mrf.mxu0
  %2171 = vmatprep.mubr.bf16.mxu0 0
  %2172 = vmatmul.mubr.bf16.gmra.mxu0 %v2101
  %v2173 = vpop.f32.mrf.mxu0
  %v2174 = vadd.f32 %v2068, %v2173
  %v2175 = vpop.f32.mrf.mxu0
  %v2176 = vpop.f32.mrf.mxu0
  %v2177 = vadd.f32 %v2069, %v2176
  %v2178 = vpop.f32.mrf.mxu0
  %2179 = vmatprep.mubr.bf16.mxu0 0
  %2180 = vmatmul.mubr.bf16.gmra.mxu0 %v2104
  %v2181 = vpop.f32.mrf.mxu0
  %v2182 = vadd.f32 %v2070, %v2181
  %v2183 = vpop.f32.mrf.mxu0
  %v2184 = vpop.f32.mrf.mxu0
  %v2185 = vadd.f32 %v2071, %v2184
  %v2186 = vpop.f32.mrf.mxu0
  %2187 = vmatprep.mubr.bf16.mxu0 0
  %2188 = vmatmul.mubr.bf16.gmra.mxu0 %v2107
  %v2189 = vpop.f32.mrf.mxu0
  %v2190 = vadd.f32 %v2072, %v2189
  %v2191 = vpop.f32.mrf.mxu0
  %v2192 = vpop.f32.mrf.mxu0
  %v2193 = vadd.f32 %v2073, %v2192
  %v2194 = vpop.f32.mrf.mxu0
  %2195 = vmatprep.mubr.bf16.mxu0 0
  %2196 = vmatmul.mubr.bf16.gmra.mxu0 %v2110
  %v2197 = vpop.f32.mrf.mxu0
  %v2198 = vadd.f32 %v2074, %v2197
  %v2199 = vpop.f32.mrf.mxu0
  %v2200 = vpop.f32.mrf.mxu0
  %v2201 = vadd.f32 %v2075, %v2200
  %v2202 = vpop.f32.mrf.mxu0
  %2203 = vmatprep.mubr.bf16.mxu0 0
  %2204 = vmatmul.mubr.bf16.gmra.mxu0 %v2113
  %v2205 = vpop.f32.mrf.mxu0
  %v2206 = vadd.f32 %v2076, %v2205
  %v2207 = vpop.f32.mrf.mxu0
  %v2208 = vpop.f32.mrf.mxu0
  %v2209 = vadd.f32 %v2077, %v2208
  %v2210 = vpop.f32.mrf.mxu0
  %2211 = vdwg.mxu0
  %v2212 = vsub.f32 0.0, %v2150
  %v2213 = vsub.f32 0.0, %v2153
  %v2214 = vsub.f32 0.0, %v2158
  %v2215 = vsub.f32 0.0, %v2161
  %v2216 = vsub.f32 0.0, %v2166
  %v2217 = vsub.f32 0.0, %v2169
  %v2218 = vsub.f32 0.0, %v2174
  %v2219 = vsub.f32 0.0, %v2177
  %v2220 = vsub.f32 0.0, %v2182
  %v2221 = vsub.f32 0.0, %v2185
  %v2222 = vsub.f32 0.0, %v2190
  %v2223 = vsub.f32 0.0, %v2193
  %v2224 = vsub.f32 0.0, %v2198
  %v2225 = vsub.f32 0.0, %v2201
  %v2226 = vsub.f32 0.0, %v2206
  %v2227 = vsub.f32 0.0, %v2209
  %v2228 = vmul.f32 %v2212, 1.442695
  %v2229 = vpow.pop %v2228
  %v2230 = vmul.f32 %v2213, 1.442695
  %v2231 = vpow.pop %v2230
  %v2232 = vmul.f32 %v2214, 1.442695
  %v2233 = vpow.pop %v2232
  %v2234 = vmul.f32 %v2215, 1.442695
  %v2235 = vpow.pop %v2234
  %v2236 = vmul.f32 %v2216, 1.442695
  %v2237 = vpow.pop %v2236
  %v2238 = vmul.f32 %v2217, 1.442695
  %v2239 = vpow.pop %v2238
  %v2240 = vmul.f32 %v2218, 1.442695
  %v2241 = vpow.pop %v2240
  %v2242 = vmul.f32 %v2219, 1.442695
  %v2243 = vpow.pop %v2242
  %v2244 = vmul.f32 %v2220, 1.442695
  %v2245 = vpow.pop %v2244
  %v2246 = vmul.f32 %v2221, 1.442695
  %v2247 = vpow.pop %v2246
  %v2248 = vmul.f32 %v2222, 1.442695
  %v2249 = vpow.pop %v2248
  %v2250 = vmul.f32 %v2223, 1.442695
  %v2251 = vpow.pop %v2250
  %v2252 = vmul.f32 %v2224, 1.442695
  %v2253 = vpow.pop %v2252
  %v2254 = vmul.f32 %v2225, 1.442695
  %v2255 = vpow.pop %v2254
  %v2256 = vmul.f32 %v2226, 1.442695
  %v2257 = vpow.pop %v2256
  %v2258 = vmul.f32 %v2227, 1.442695
  %v2259 = vpow.pop %v2258
  %v2260 = vadd.f32 %v2229, 1.0
  %v2261 = vadd.f32 %v2231, 1.0
  %v2262 = vadd.f32 %v2233, 1.0
  %v2263 = vadd.f32 %v2235, 1.0
  %v2264 = vadd.f32 %v2237, 1.0
  %v2265 = vadd.f32 %v2239, 1.0
  %v2266 = vadd.f32 %v2241, 1.0
  %v2267 = vadd.f32 %v2243, 1.0
  %v2268 = vadd.f32 %v2245, 1.0
  %v2269 = vadd.f32 %v2247, 1.0
  %v2270 = vadd.f32 %v2249, 1.0
  %v2271 = vadd.f32 %v2251, 1.0
  %v2272 = vadd.f32 %v2253, 1.0
  %v2273 = vadd.f32 %v2255, 1.0
  %v2274 = vadd.f32 %v2257, 1.0
  %v2275 = vadd.f32 %v2259, 1.0
  %v2276 = vrcp.pop %v2260
  %v2277 = vrcp.pop %v2261
  %v2278 = vrcp.pop %v2262
  %v2279 = vrcp.pop %v2263
  %v2280 = vrcp.pop %v2264
  %v2281 = vrcp.pop %v2265
  %v2282 = vrcp.pop %v2266
  %v2283 = vrcp.pop %v2267
  %v2284 = vrcp.pop %v2268
  %v2285 = vrcp.pop %v2269
  %v2286 = vrcp.pop %v2270
  %v2287 = vrcp.pop %v2271
  %v2288 = vrcp.pop %v2272
  %v2289 = vrcp.pop %v2273
  %v2290 = vrcp.pop %v2274
  %v2291 = vrcp.pop %v2275
  %vm2292 = vcmask 130048
  %2293 = vst.msk [vmem:[%s12] sm:$0xff] %vm2292, %v2276
  %2294 = vst.msk [vmem:[%s12 + $0x8] sm:$0xff] %vm2292, %v2277
  %2295 = vst.msk [vmem:[%s12 + $0x10] sm:$0xff] %vm2292, %v2278
  %2296 = vst.msk [vmem:[%s12 + $0x18] sm:$0xff] %vm2292, %v2279
  %2297 = vst.msk [vmem:[%s12 + $0x20] sm:$0xff] %vm2292, %v2280
  %2298 = vst.msk [vmem:[%s12 + $0x28] sm:$0xff] %vm2292, %v2281
  %2299 = vst.msk [vmem:[%s12 + $0x30] sm:$0xff] %vm2292, %v2282
  %2300 = vst.msk [vmem:[%s12 + $0x38] sm:$0xff] %vm2292, %v2283
  %2301 = vst.msk [vmem:[%s12 + $0x40] sm:$0xff] %vm2292, %v2284
  %2302 = vst.msk [vmem:[%s12 + $0x48] sm:$0xff] %vm2292, %v2285
  %2303 = vst.msk [vmem:[%s12 + $0x50] sm:$0xff] %vm2292, %v2286
  %2304 = vst.msk [vmem:[%s12 + $0x58] sm:$0xff] %vm2292, %v2287
  %2305 = vst.msk [vmem:[%s12 + $0x60] sm:$0xff] %vm2292, %v2288
  %2306 = vst.msk [vmem:[%s12 + $0x68] sm:$0xff] %vm2292, %v2289
  %2307 = vst.msk [vmem:[%s12 + $0x70] sm:$0xff] %vm2292, %v2290
  %2308 = vst.msk [vmem:[%s12 + $0x78] sm:$0xff] %vm2292, %v2291
  // Predicated region
  $region57: #{tpu_custom_call.1} parent=0 // pred_check
    _
  $region58: #{tpu_custom_call.1} parent=0 // pred_check_branch
    %2310 = sbr.rel (0) target = $region60
  $region59: #{tpu_custom_call.1} parent=0 // pred_region
    _
  $region60: #{tpu_custom_call.1} parent=0 // pred_fallthru
    _
  // Predicated region
  $region61: #{tpu_custom_call.1} parent=0 // pred_check
    _
  $region62: #{tpu_custom_call.1} parent=0 // pred_check_branch
    %2312 = sbr.rel (0) target = $region64
  $region63: #{tpu_custom_call.1} parent=0 // pred_region
    _
  $region64: #{tpu_custom_call.1} parent=0 // pred_fallthru
    _

</llo_original>
